<compile_context>
chip_gen: v6e
topology: v6e:2x2x1
jax: 0.10.0
libtpu: 0.0.40
codegen_flags: <defaults>
</compile_context>

<pallas_src>
import functools

import jax
import jax.numpy as jnp
from jax import lax
from jax.experimental import pallas as pl
from jax.experimental.pallas import tpu as pltpu

# MXU operand dtype for the big matmuls.  float32 preserves exact reference
# numerics; set to jnp.bfloat16 on v5e/v6e/v7x for ~2x MXU throughput and
# halved adjacency bandwidth at scale (0/1 adjacency is exact in bf16,
# accumulation stays f32 via preferred_element_type).
MXU_DTYPE = jnp.float32


def round_up(x, m=128):
    return ((x + m - 1) // m) * m


def pad2(x, rows, cols):
    return jnp.pad(x, ((0, rows - x.shape[0]), (0, cols - x.shape[1])))


# ----------------------------------------------------------------------------
# Fused per-metapath GIN kernel (conv layers + pool + predict + L2 norm)
# ----------------------------------------------------------------------------
def _fused_gin_kernel(a_ref, x_ref, pm_ref, w1_ref, b1_ref, w2_ref, b2_ref,
                      wp_ref, bp_ref, o_ref, *, norm):
    """Whole UnsupervisedGIN forward for one metapath (all B graphs at once).

    Block shapes (grid step = metapath index m):
      a_ref  : (1, B, N, N)          adjacency with self loops folded in (A+I)
      x_ref  : (1, B, N, Dp)         zero-padded node features
      pm_ref : (B, B*N)              sum-pool matrix (ones over each graph)
      w1_ref : (1, L, Dp, Dp)        GIN MLP first linear  (L = ge_layer - 1)
      b1_ref : (1, L, 1, Dp)
      w2_ref : (1, L, Dp, Dp)        GIN MLP second linear
      b2_ref : (1, L, 1, Dp)
      wp_ref : (1, ge_layer, Dp, Dop) per-hidden-rep prediction linears
      bp_ref : (1, ge_layer, 1, Dop)
      o_ref  : (1, B, Dop)           (L2-normalized) subgraph embedding
    """
    _, B, N, _ = a_ref.shape
    Dp = x_ref.shape[-1]
    L = w1_ref.shape[1]

    a = a_ref[0].astype(MXU_DTYPE)              # (B, N, N)
    pm = pm_ref[...].astype(MXU_DTYPE)          # (B, B*N)
    h3 = x_ref[0]                               # (B, N, Dp)
    h2 = h3.reshape(B * N, Dp)                  # (B*N, Dp)

    def pooled_prediction(h_flat, layer):
        # sum-pool all B graphs via one ones-matrix matmul on the MXU ...
        pooled = jnp.dot(pm, h_flat.astype(MXU_DTYPE),
                         preferred_element_type=jnp.float32)        # (B, Dp)
        # ... then one (B, Dp)·(Dp, Dop) prediction linear
        return (jnp.dot(pooled.astype(MXU_DTYPE),
                        wp_ref[0, layer].astype(MXU_DTYPE),
                        preferred_element_type=jnp.float32)
                + bp_ref[0, layer])                                  # (B, Dop)

    score = pooled_prediction(h2, 0)
    for l in range(L):
        # GIN aggregation, eps=0: (A + I) @ h   (self term folded into `a`)
        agg = jnp.einsum('bij,bjd->bid', a, h3.astype(MXU_DTYPE),
                         preferred_element_type=jnp.float32)         # (B, N, Dp)
        # 2-layer MLP node update as single (B*N, Dp) matmuls.
        # TODO(synk): BatchNorm treated as eval-mode identity.
        z = agg.reshape(B * N, Dp)
        z = jnp.dot(z.astype(MXU_DTYPE), w1_ref[0, l].astype(MXU_DTYPE),
                    preferred_element_type=jnp.float32) + b1_ref[0, l]
        z = jnp.maximum(z, 0.0)
        z = jnp.dot(z.astype(MXU_DTYPE), w2_ref[0, l].astype(MXU_DTYPE),
                    preferred_element_type=jnp.float32) + b2_ref[0, l]
        z = jnp.maximum(z, 0.0)
        h2 = z
        h3 = z.reshape(B, N, Dp)
        score = score + pooled_prediction(h2, l + 1)

    if norm:
        # F.normalize(p=2, eps=1e-5): x / max(||x||, eps)
        #   == x * rsqrt(max(||x||^2, eps^2));  rsqrt runs on the EUP.
        ssq = jnp.sum(score * score, axis=-1, keepdims=True)
        score = score * lax.rsqrt(jnp.maximum(ssq, 1e-10))
    o_ref[0] = score


def fused_gin_forward(adj_hat, feats_pad, pool_mat, packed, norm=True):
    M, B, N, _ = adj_hat.shape
    Dp = feats_pad.shape[-1]
    L = packed['w1s'].shape[1]
    n_pred = packed['wps'].shape[1]
    Dop = packed['wps'].shape[-1]
    kernel = functools.partial(_fused_gin_kernel, norm=norm)
    return pl.pallas_call(
        kernel,
        out_shape=jax.ShapeDtypeStruct((M, B, Dop), jnp.float32),
        grid=(M,),
        in_specs=[
            pl.BlockSpec((1, B, N, N), lambda m: (m, 0, 0, 0)),
            pl.BlockSpec((1, B, N, Dp), lambda m: (m, 0, 0, 0)),
            pl.BlockSpec((B, B * N), lambda m: (0, 0)),
            pl.BlockSpec((1, L, Dp, Dp), lambda m: (m, 0, 0, 0)),
            pl.BlockSpec((1, L, 1, Dp), lambda m: (m, 0, 0, 0)),
            pl.BlockSpec((1, L, Dp, Dp), lambda m: (m, 0, 0, 0)),
            pl.BlockSpec((1, L, 1, Dp), lambda m: (m, 0, 0, 0)),
            pl.BlockSpec((1, n_pred, Dp, Dop), lambda m: (m, 0, 0, 0)),
            pl.BlockSpec((1, n_pred, 1, Dop), lambda m: (m, 0, 0, 0)),
        ],
        out_specs=pl.BlockSpec((1, B, Dop), lambda m: (m, 0, 0)),
        compiler_params=pltpu.CompilerParams(
            dimension_semantics=("parallel",)),
    )(adj_hat, feats_pad, pool_mat,
      packed['w1s'], packed['b1s'], packed['w2s'], packed['b2s'],
      packed['wps'], packed['bps'])


# ----------------------------------------------------------------------------
# Fused view-encoder kernel: all (src -> tgt) MLPs in one batched call
# ----------------------------------------------------------------------------
def _view_mlp_kernel(*refs):
    """Fused MLP view encoder for one (src->tgt) pair (grid step = pair index).

    refs = (x_ref, w_0, b_0, ..., w_{L-1}, b_{L-1}, o_ref)
      x_ref: (1, B, Dop) padded source-view embedding
      w_l  : (1, Din_l, Dout_l),  b_l: (1, 1, Dout_l)
      o_ref: (1, B, Dop)
    """
    x_ref, o_ref = refs[0], refs[-1]
    n_layers = (len(refs) - 2) // 2
    h = x_ref[0]
    for l in range(n_layers):
        w = refs[1 + 2 * l][0]
        b = refs[2 + 2 * l][0]
        h = jnp.dot(h.astype(MXU_DTYPE), w.astype(MXU_DTYPE),
                    preferred_element_type=jnp.float32) + b
        if l < n_layers - 1:
            # TODO(synk): BatchNorm in the MLP treated as eval-mode identity.
            h = jnp.maximum(h, 0.0)
    o_ref[0] = h


def fused_view_mlp(x_pairs, layer_ws, layer_bs):
    P, B, Dop = x_pairs.shape
    in_specs = [pl.BlockSpec((1, B, Dop), lambda p: (p, 0, 0))]
    args = [x_pairs]
    for w, b in zip(layer_ws, layer_bs):
        _, din, dout = w.shape
        in_specs.append(pl.BlockSpec((1, din, dout), lambda p: (p, 0, 0)))
        in_specs.append(pl.BlockSpec((1, 1, dout), lambda p: (p, 0, 0)))
        args.extend([w, b])
    out_dim = layer_ws[-1].shape[-1]
    return pl.pallas_call(
        _view_mlp_kernel,
        out_shape=jax.ShapeDtypeStruct((P, B, out_dim), jnp.float32),
        grid=(P,),
        in_specs=in_specs,
        out_specs=pl.BlockSpec((1, B, out_dim), lambda p: (p, 0, 0)),
        compiler_params=pltpu.CompilerParams(
            dimension_semantics=("parallel",)),
    )(*args)


# ----------------------------------------------------------------------------
# Parameter construction (deterministic, PyTorch-Linear-style uniform init)
# ----------------------------------------------------------------------------
def init_linear(key, din, dout):
    kw, kb = jax.random.split(key)
    bound = 1.0 / float(din) ** 0.5
    w = jax.random.uniform(kw, (din, dout), jnp.float32, -bound, bound)
    b = jax.random.uniform(kb, (1, dout), jnp.float32, -bound, bound)
    return w, b


def init_gin_params(key, n_feat, node_emb_dim, subg_emb_dim, ge_layer):
    keys = jax.random.split(key, 4 * (ge_layer - 1) + 2 * ge_layer)
    ki = iter(keys)
    gin_layers = []
    for layer in range(ge_layer - 1):
        din = n_feat if layer == 0 else node_emb_dim
        w1, b1 = init_linear(next(ki), din, node_emb_dim)
        w2, b2 = init_linear(next(ki), node_emb_dim, node_emb_dim)
        gin_layers.append((w1, b1, w2, b2))
    pred_linears = []
    for layer in range(ge_layer):
        din = n_feat if layer == 0 else node_emb_dim
        pred_linears.append(init_linear(next(ki), din, subg_emb_dim))
    return {"gin_layers": gin_layers, "pred_linears": pred_linears}


def init_view_mlp(key, input_dim, hidden_dim, output_dim, n_layers):
    if n_layers == 1:
        return [init_linear(key, input_dim, output_dim)]
    keys = jax.random.split(key, n_layers)
    layers = [init_linear(keys[0], input_dim, hidden_dim)]
    for i in range(1, n_layers - 1):
        layers.append(init_linear(keys[i], hidden_dim, hidden_dim))
    layers.append(init_linear(keys[-1], hidden_dim, output_dim))
    return layers


# ----------------------------------------------------------------------------
# Packing: zero-pad every feature axis to a lane-dense width and stack layers
# ----------------------------------------------------------------------------
def pack_gin_params(gnn_params, Dp, Dop):
    w1s, b1s, w2s, b2s, wps, bps = [], [], [], [], [], []
    for p in gnn_params:
        w1s.append(jnp.stack([pad2(w1, Dp, Dp) for (w1, _, _, _) in p["gin_layers"]]))
        b1s.append(jnp.stack([pad2(b1, 1, Dp) for (_, b1, _, _) in p["gin_layers"]]))
        w2s.append(jnp.stack([pad2(w2, Dp, Dp) for (_, _, w2, _) in p["gin_layers"]]))
        b2s.append(jnp.stack([pad2(b2, 1, Dp) for (_, _, _, b2) in p["gin_layers"]]))
        wps.append(jnp.stack([pad2(wp, Dp, Dop) for (wp, _) in p["pred_linears"]]))
        bps.append(jnp.stack([pad2(bp, 1, Dop) for (_, bp) in p["pred_linears"]]))
    return {"w1s": jnp.stack(w1s), "b1s": jnp.stack(b1s),
            "w2s": jnp.stack(w2s), "b2s": jnp.stack(b2s),
            "wps": jnp.stack(wps), "bps": jnp.stack(bps)}


def pack_view_params(view_params, pairs, Dop, Hmp, n_layers):
    ws, bs = [], []
    for l in range(n_layers):
        din = Dop if l == 0 else Hmp
        dout = Dop if l == n_layers - 1 else Hmp
        ws.append(jnp.stack([pad2(view_params[pr][l][0], din, dout) for pr in pairs]))
        bs.append(jnp.stack([pad2(view_params[pr][l][1], 1, dout) for pr in pairs]))
    return {"ws": ws, "bs": bs}


# ----------------------------------------------------------------------------
# Forward pass (mirrors HeteGraphEncoder.forward)
# ----------------------------------------------------------------------------
def hete_graph_encoder_forward(packed_gnn, packed_view, adj_hat, feats_pad,
                               pool_mat, *, pairs, subg_emb_dim,
                               norm=True, mode="mv_tensor"):
    # one fused kernel: GIN conv layers + sum-pool + predict + L2 normalize
    emb_pad = fused_gin_forward(adj_hat, feats_pad, pool_mat, packed_gnn,
                                norm=norm)                     # (M, B, Dop)
    M = emb_pad.shape[0]
    emb = emb_pad[:, :, :subg_emb_dim]                         # (M, B, Do)
    graph_emb_list = [emb[m] for m in range(M)]
    cat_emb = jnp.concatenate(graph_emb_list, axis=1)

    if mode == "cat":
        return cat_emb
    if mode == "list":
        return graph_emb_list

    # mv_tensor: one fused, batched kernel over all (src != tgt) pairs
    x_pairs = jnp.stack([emb_pad[src] for (src, _tgt) in pairs])   # (P, B, Dop)
    view_out = fused_view_mlp(x_pairs, packed_view["ws"], packed_view["bs"])
    view_out = view_out[:, :, :subg_emb_dim]
    pair_idx = {pr: i for i, pr in enumerate(pairs)}
    mv_emb_list = []
    for tgt in range(M):
        row = []
        for src in range(M):
            if src == tgt:
                row.append(graph_emb_list[tgt])
            else:
                row.append(view_out[pair_idx[(src, tgt)]])
        mv_emb_list.append(row)
    return cat_emb, mv_emb_list


# ----------------------------------------------------------------------------
# Main
# ----------------------------------------------------------------------------
if __name__ == "__main__":
    # small synthetic configuration
    M = 2                 # number of metapaths
    B = 2                 # graphs per batch
    N = 16                # (padded) nodes per graph
    n_feat = 8
    node_emb_dim = 16
    subg_emb_dim = 16
    ge_layer = 3
    mv_hidden_size = 32
    mv_map_layer = 2

    # lane-dense padded widths (all -> 128 here)
    Dp = round_up(max(n_feat, node_emb_dim))
    Dop = round_up(subg_emb_dim)
    Hmp = round_up(mv_hidden_size)

    root = jax.random.PRNGKey(0)
    k_data, k_gnn, k_view = jax.random.split(root, 3)

    # deterministic metapath subgraphs: dense adjacency + node features
    adjs, feats = [], []
    dkeys = jax.random.split(k_data, 2 * M)
    eye = jnp.eye(N, dtype=jnp.float32)
    for mp in range(M):
        a = (jax.random.uniform(dkeys[2 * mp], (B, N, N)) < 0.3).astype(jnp.float32)
        a = jnp.maximum(a, jnp.swapaxes(a, 1, 2))     # symmetrize
        a = a * (1.0 - eye[None])                      # no self loops
        f = jax.random.normal(dkeys[2 * mp + 1], (B, N, n_feat), jnp.float32)
        adjs.append(a)
        feats.append(f)

    # stack metapaths, fold GIN self term (eps=0) into the adjacency once
    adj_hat = jnp.stack(adjs) + eye[None, None]                       # (M, B, N, N)
    feats_pad = jnp.pad(jnp.stack(feats),
                        ((0, 0), (0, 0), (0, 0), (0, Dp - n_feat)))   # (M, B, N, Dp)
    # ones-matrix used for MXU sum-pooling of all B graphs at once
    pool_mat = jnp.repeat(jnp.eye(B, dtype=jnp.float32), N, axis=1)   # (B, B*N)

    # ge_mode='mp_spec': one GIN per metapath
    gkeys = jax.random.split(k_gnn, M)
    gnn_params = [
        init_gin_params(gkeys[mp], n_feat, node_emb_dim, subg_emb_dim, ge_layer)
        for mp in range(M)
    ]
    packed_gnn = pack_gin_params(gnn_params, Dp, Dop)

    # view encoders for every (src -> tgt), src != tgt
    pairs = tuple((src, tgt) for tgt in range(M) for src in range(M) if src != tgt)
    view_params = {}
    vkeys = jax.random.split(k_view, M * M)
    for tgt in range(M):
        for src in range(M):
            if src != tgt:
                view_params[(src, tgt)] = init_view_mlp(
                    vkeys[tgt * M + src], subg_emb_dim, mv_hidden_size,
                    subg_emb_dim, mv_map_layer)
    assert all(pr in view_params for pr in pairs)
    packed_view = pack_view_params(view_params, pairs, Dop, Hmp, mv_map_layer)

    fwd = jax.jit(functools.partial(
        hete_graph_encoder_forward, pairs=pairs, subg_emb_dim=subg_emb_dim,
        norm=True, mode="mv_tensor"))
    cat_emb, mv_emb_list = fwd(packed_gnn, packed_view, adj_hat, feats_pad, pool_mat)

    jax.block_until_ready(cat_emb)
    for row in mv_emb_list:
        for emb in row:
            jax.block_until_ready(emb)

    assert cat_emb.shape == (B, M * subg_emb_dim)
    assert all(e.shape == (B, subg_emb_dim) for row in mv_emb_list for e in row)
    print("KERNEL_OK")
</pallas_src>

<mosaic_0001>
module attributes {stable_mosaic.version = 11 : i64} {
  func.func @_view_mlp_kernel(%arg0: i32, %arg1: memref<1x2x128xf32, #tpu.memory_space<vmem>>, %arg2: memref<1x128x128xf32, #tpu.memory_space<vmem>>, %arg3: memref<1x1x128xf32, #tpu.memory_space<vmem>>, %arg4: memref<1x128x128xf32, #tpu.memory_space<vmem>>, %arg5: memref<1x1x128xf32, #tpu.memory_space<vmem>>, %arg6: memref<1x2x128xf32, #tpu.memory_space<vmem>>) attributes {dimension_semantics = [#tpu.dimension_semantics<parallel>], iteration_bounds = array<i64: 2>, scalar_prefetch = 0 : i64, scratch_operands = 0 : i64, tpu.core_type = #tpu.core_type<tc>, window_params = [{transform_indices = @transform_0, window_bounds = array<i64: 1, 2, 128>}, {transform_indices = @transform_1, window_bounds = array<i64: 1, 128, 128>}, {transform_indices = @transform_2, window_bounds = array<i64: 1, 1, 128>}, {transform_indices = @transform_3, window_bounds = array<i64: 1, 128, 128>}, {transform_indices = @transform_4, window_bounds = array<i64: 1, 1, 128>}, {transform_indices = @transform_5, window_bounds = array<i64: 1, 2, 128>}]} {
    %c0 = arith.constant 0 : index
    %c0_0 = arith.constant 0 : index
    %c0_1 = arith.constant 0 : index
    %0 = vector.load %arg1[%c0, %c0_0, %c0_1] : memref<1x2x128xf32, #tpu.memory_space<vmem>>, vector<1x2x128xf32>
    %1 = vector.shape_cast %0 : vector<1x2x128xf32> to vector<2x128xf32>
    %c0_2 = arith.constant 0 : index
    %c0_3 = arith.constant 0 : index
    %c0_4 = arith.constant 0 : index
    %2 = vector.load %arg2[%c0_2, %c0_3, %c0_4] : memref<1x128x128xf32, #tpu.memory_space<vmem>>, vector<1x128x128xf32>
    %3 = vector.shape_cast %2 : vector<1x128x128xf32> to vector<128x128xf32>
    %c0_5 = arith.constant 0 : index
    %c0_6 = arith.constant 0 : index
    %c0_7 = arith.constant 0 : index
    %4 = vector.load %arg3[%c0_5, %c0_6, %c0_7] : memref<1x1x128xf32, #tpu.memory_space<vmem>>, vector<1x1x128xf32>
    %5 = vector.shape_cast %4 : vector<1x1x128xf32> to vector<1x128xf32>
    %cst = arith.constant dense<0.000000e+00> : vector<2x128xf32>
    %6 = tpu.matmul %1, %3, %cst {dimension_numbers = #tpu.dot_dimension_numbers<[1], [0], [0], [1], [0, 0, 1, 1], [], []>} : vector<2x128xf32>, vector<128x128xf32>, vector<2x128xf32> -> vector<2x128xf32>
    %7 = vector.broadcast %5 : vector<1x128xf32> to vector<2x128xf32>
    %8 = arith.addf %6, %7 : vector<2x128xf32>
    %cst_8 = arith.constant 0.000000e+00 : f32
    %9 = vector.broadcast %cst_8 : f32 to vector<2x128xf32>
    %10 = arith.maximumf %8, %9 : vector<2x128xf32>
    %c0_9 = arith.constant 0 : index
    %c0_10 = arith.constant 0 : index
    %c0_11 = arith.constant 0 : index
    %11 = vector.load %arg4[%c0_9, %c0_10, %c0_11] : memref<1x128x128xf32, #tpu.memory_space<vmem>>, vector<1x128x128xf32>
    %12 = vector.shape_cast %11 : vector<1x128x128xf32> to vector<128x128xf32>
    %c0_12 = arith.constant 0 : index
    %c0_13 = arith.constant 0 : index
    %c0_14 = arith.constant 0 : index
    %13 = vector.load %arg5[%c0_12, %c0_13, %c0_14] : memref<1x1x128xf32, #tpu.memory_space<vmem>>, vector<1x1x128xf32>
    %14 = vector.shape_cast %13 : vector<1x1x128xf32> to vector<1x128xf32>
    %cst_15 = arith.constant dense<0.000000e+00> : vector<2x128xf32>
    %15 = tpu.matmul %10, %12, %cst_15 {dimension_numbers = #tpu.dot_dimension_numbers<[1], [0], [0], [1], [0, 0, 1, 1], [], []>} : vector<2x128xf32>, vector<128x128xf32>, vector<2x128xf32> -> vector<2x128xf32>
    %16 = vector.broadcast %14 : vector<1x128xf32> to vector<2x128xf32>
    %17 = arith.addf %15, %16 : vector<2x128xf32>
    %c0_16 = arith.constant 0 : index
    %c0_17 = arith.constant 0 : index
    %c0_18 = arith.constant 0 : index
    %18 = vector.load %arg6[%c0_16, %c0_17, %c0_18] : memref<1x2x128xf32, #tpu.memory_space<vmem>>, vector<1x2x128xf32>
    %19 = vector.shape_cast %18 : vector<1x2x128xf32> to vector<2x128xf32>
    %20 = vector.shape_cast %17 : vector<2x128xf32> to vector<1x2x128xf32>
    tpu.vector_store %arg6[%c0_16, %c0_17, %c0_18], %20 {strides = array<i32>} : memref<1x2x128xf32, #tpu.memory_space<vmem>>, vector<1x2x128xf32>,
    return
  }
  func.func @transform_0(%arg0: i32) -> (i32, i32, i32) {
    %c0_i32 = arith.constant 0 : i32
    %c0_i32_0 = arith.constant 0 : i32
    %c0_i32_1 = arith.constant 0 : i32
    return %arg0, %c0_i32, %c0_i32_0 : i32, i32, i32
  }
  func.func @transform_1(%arg0: i32) -> (i32, i32, i32) {
    %c0_i32 = arith.constant 0 : i32
    %c0_i32_0 = arith.constant 0 : i32
    %c0_i32_1 = arith.constant 0 : i32
    return %arg0, %c0_i32, %c0_i32_0 : i32, i32, i32
  }
  func.func @transform_2(%arg0: i32) -> (i32, i32, i32) {
    %c0_i32 = arith.constant 0 : i32
    %c0_i32_0 = arith.constant 0 : i32
    %c0_i32_1 = arith.constant 0 : i32
    return %arg0, %c0_i32, %c0_i32_0 : i32, i32, i32
  }
  func.func @transform_3(%arg0: i32) -> (i32, i32, i32) {
    %c0_i32 = arith.constant 0 : i32
    %c0_i32_0 = arith.constant 0 : i32
    %c0_i32_1 = arith.constant 0 : i32
    return %arg0, %c0_i32, %c0_i32_0 : i32, i32, i32
  }
  func.func @transform_4(%arg0: i32) -> (i32, i32, i32) {
    %c0_i32 = arith.constant 0 : i32
    %c0_i32_0 = arith.constant 0 : i32
    %c0_i32_1 = arith.constant 0 : i32
    return %arg0, %c0_i32, %c0_i32_0 : i32, i32, i32
  }
  func.func @transform_5(%arg0: i32) -> (i32, i32, i32) {
    %c0_i32 = arith.constant 0 : i32
    %c0_i32_0 = arith.constant 0 : i32
    %c0_i32_1 = arith.constant 0 : i32
    return %arg0, %c0_i32, %c0_i32_0 : i32, i32, i32
  }
}

module attributes {stable_mosaic.version = 11 : i64} {
  func.func @_fused_gin_kernel(%arg0: i32, %arg1: memref<1x2x16x16xf32, #tpu.memory_space<vmem>>, %arg2: memref<1x2x16x128xf32, #tpu.memory_space<vmem>>, %arg3: memref<2x32xf32, #tpu.memory_space<vmem>>, %arg4: memref<1x2x128x128xf32, #tpu.memory_space<vmem>>, %arg5: memref<1x2x1x128xf32, #tpu.memory_space<vmem>>, %arg6: memref<1x2x128x128xf32, #tpu.memory_space<vmem>>, %arg7: memref<1x2x1x128xf32, #tpu.memory_space<vmem>>, %arg8: memref<1x3x128x128xf32, #tpu.memory_space<vmem>>, %arg9: memref<1x3x1x128xf32, #tpu.memory_space<vmem>>, %arg10: memref<1x2x128xf32, #tpu.memory_space<vmem>>) attributes {dimension_semantics = [#tpu.dimension_semantics<parallel>], iteration_bounds = array<i64: 2>, scalar_prefetch = 0 : i64, scratch_operands = 0 : i64, tpu.core_type = #tpu.core_type<tc>, window_params = [{transform_indices = @transform_0, window_bounds = array<i64: 1, 2, 16, 16>}, {transform_indices = @transform_1, window_bounds = array<i64: 1, 2, 16, 128>}, {pipeline_mode = #tpu.pipeline_mode<synchronous>, transform_indices = @transform_2, window_bounds = array<i64: 2, 32>}, {transform_indices = @transform_3, window_bounds = array<i64: 1, 2, 128, 128>}, {transform_indices = @transform_4, window_bounds = array<i64: 1, 2, 1, 128>}, {transform_indices = @transform_5, window_bounds = array<i64: 1, 2, 128, 128>}, {transform_indices = @transform_6, window_bounds = array<i64: 1, 2, 1, 128>}, {transform_indices = @transform_7, window_bounds = array<i64: 1, 3, 128, 128>}, {transform_indices = @transform_8, window_bounds = array<i64: 1, 3, 1, 128>}, {transform_indices = @transform_9, window_bounds = array<i64: 1, 2, 128>}]} {
    %c0 = arith.constant 0 : index
    %c0_0 = arith.constant 0 : index
    %c0_1 = arith.constant 0 : index
    %c0_2 = arith.constant 0 : index
    %0 = vector.load %arg1[%c0, %c0_0, %c0_1, %c0_2] : memref<1x2x16x16xf32, #tpu.memory_space<vmem>>, vector<1x2x16x16xf32>
    %1 = vector.shape_cast %0 : vector<1x2x16x16xf32> to vector<2x16x16xf32>
    %c0_3 = arith.constant 0 : index
    %c0_4 = arith.constant 0 : index
    %2 = vector.load %arg3[%c0_3, %c0_4] : memref<2x32xf32, #tpu.memory_space<vmem>>, vector<2x32xf32>
    %c0_5 = arith.constant 0 : index
    %c0_6 = arith.constant 0 : index
    %c0_7 = arith.constant 0 : index
    %c0_8 = arith.constant 0 : index
    %3 = vector.load %arg2[%c0_5, %c0_6, %c0_7, %c0_8] : memref<1x2x16x128xf32, #tpu.memory_space<vmem>>, vector<1x2x16x128xf32>
    %4 = vector.shape_cast %3 : vector<1x2x16x128xf32> to vector<2x16x128xf32>
    %5 = vector.shape_cast %4 : vector<2x16x128xf32> to vector<32x128xf32>
    %cst = arith.constant dense<0.000000e+00> : vector<2x128xf32>
    %6 = tpu.matmul %2, %5, %cst {dimension_numbers = #tpu.dot_dimension_numbers<[1], [0], [0], [1], [0, 0, 1, 1], [], []>} : vector<2x32xf32>, vector<32x128xf32>, vector<2x128xf32> -> vector<2x128xf32>
    %c0_9 = arith.constant 0 : index
    %c0_10 = arith.constant 0 : index
    %c0_11 = arith.constant 0 : index
    %c0_12 = arith.constant 0 : index
    %7 = vector.load %arg8[%c0_9, %c0_10, %c0_11, %c0_12] : memref<1x3x128x128xf32, #tpu.memory_space<vmem>>, vector<1x1x128x128xf32>
    %8 = vector.shape_cast %7 : vector<1x1x128x128xf32> to vector<128x128xf32>
    %cst_13 = arith.constant dense<0.000000e+00> : vector<2x128xf32>
    %9 = tpu.matmul %6, %8, %cst_13 {dimension_numbers = #tpu.dot_dimension_numbers<[1], [0], [0], [1], [0, 0, 1, 1], [], []>} : vector<2x128xf32>, vector<128x128xf32>, vector<2x128xf32> -> vector<2x128xf32>
    %c0_14 = arith.constant 0 : index
    %c0_15 = arith.constant 0 : index
    %c0_16 = arith.constant 0 : index
    %c0_17 = arith.constant 0 : index
    %10 = vector.load %arg9[%c0_14, %c0_15, %c0_16, %c0_17] : memref<1x3x1x128xf32, #tpu.memory_space<vmem>>, vector<1x1x1x128xf32>
    %11 = vector.shape_cast %10 : vector<1x1x1x128xf32> to vector<1x128xf32>
    %12 = vector.broadcast %11 : vector<1x128xf32> to vector<2x128xf32>
    %13 = arith.addf %9, %12 : vector<2x128xf32>
    "tpu.trace_start"() <{level = 10 : i32, message = "bij,bjd->bid"}> : () -> ()
    %cst_18 = arith.constant dense<0.000000e+00> : vector<2x16x128xf32>
    %14 = tpu.matmul %1, %4, %cst_18 {dimension_numbers = #tpu.dot_dimension_numbers<[2], [1], [1], [2], [0, 0, 0, 1, 1, 2], [0], [0]>} : vector<2x16x16xf32>, vector<2x16x128xf32>, vector<2x16x128xf32> -> vector<2x16x128xf32>
    "tpu.trace_stop"() : () -> ()
    %15 = vector.shape_cast %14 : vector<2x16x128xf32> to vector<32x128xf32>
    %c0_19 = arith.constant 0 : index
    %c0_20 = arith.constant 0 : index
    %c0_21 = arith.constant 0 : index
    %c0_22 = arith.constant 0 : index
    %16 = vector.load %arg4[%c0_19, %c0_20, %c0_21, %c0_22] : memref<1x2x128x128xf32, #tpu.memory_space<vmem>>, vector<1x1x128x128xf32>
    %17 = vector.shape_cast %16 : vector<1x1x128x128xf32> to vector<128x128xf32>
    %cst_23 = arith.constant dense<0.000000e+00> : vector<32x128xf32>
    %18 = tpu.matmul %15, %17, %cst_23 {dimension_numbers = #tpu.dot_dimension_numbers<[1], [0], [0], [1], [0, 0, 1, 1], [], []>} : vector<32x128xf32>, vector<128x128xf32>, vector<32x128xf32> -> vector<32x128xf32>
    %c0_24 = arith.constant 0 : index
    %c0_25 = arith.constant 0 : index
    %c0_26 = arith.constant 0 : index
    %c0_27 = arith.constant 0 : index
    %19 = vector.load %arg5[%c0_24, %c0_25, %c0_26, %c0_27] : memref<1x2x1x128xf32, #tpu.memory_space<vmem>>, vector<1x1x1x128xf32>
    %20 = vector.shape_cast %19 : vector<1x1x1x128xf32> to vector<1x128xf32>
    %21 = vector.broadcast %20 : vector<1x128xf32> to vector<32x128xf32>
    %22 = arith.addf %18, %21 : vector<32x128xf32>
    %cst_28 = arith.constant 0.000000e+00 : f32
    %23 = vector.broadcast %cst_28 : f32 to vector<32x128xf32>
    %24 = arith.maximumf %22, %23 : vector<32x128xf32>
    %c0_29 = arith.constant 0 : index
    %c0_30 = arith.constant 0 : index
    %c0_31 = arith.constant 0 : index
    %c0_32 = arith.constant 0 : index
    %25 = vector.load %arg6[%c0_29, %c0_30, %c0_31, %c0_32] : memref<1x2x128x128xf32, #tpu.memory_space<vmem>>, vector<1x1x128x128xf32>
    %26 = vector.shape_cast %25 : vector<1x1x128x128xf32> to vector<128x128xf32>
    %cst_33 = arith.constant dense<0.000000e+00> : vector<32x128xf32>
    %27 = tpu.matmul %24, %26, %cst_33 {dimension_numbers = #tpu.dot_dimension_numbers<[1], [0], [0], [1], [0, 0, 1, 1], [], []>} : vector<32x128xf32>, vector<128x128xf32>, vector<32x128xf32> -> vector<32x128xf32>
    %c0_34 = arith.constant 0 : index
    %c0_35 = arith.constant 0 : index
    %c0_36 = arith.constant 0 : index
    %c0_37 = arith.constant 0 : index
    %28 = vector.load %arg7[%c0_34, %c0_35, %c0_36, %c0_37] : memref<1x2x1x128xf32, #tpu.memory_space<vmem>>, vector<1x1x1x128xf32>
    %29 = vector.shape_cast %28 : vector<1x1x1x128xf32> to vector<1x128xf32>
    %30 = vector.broadcast %29 : vector<1x128xf32> to vector<32x128xf32>
    %31 = arith.addf %27, %30 : vector<32x128xf32>
    %cst_38 = arith.constant 0.000000e+00 : f32
    %32 = vector.broadcast %cst_38 : f32 to vector<32x128xf32>
    %33 = arith.maximumf %31, %32 : vector<32x128xf32>
    %34 = vector.shape_cast %33 : vector<32x128xf32> to vector<2x16x128xf32>
    %cst_39 = arith.constant dense<0.000000e+00> : vector<2x128xf32>
    %35 = tpu.matmul %2, %33, %cst_39 {dimension_numbers = #tpu.dot_dimension_numbers<[1], [0], [0], [1], [0, 0, 1, 1], [], []>} : vector<2x32xf32>, vector<32x128xf32>, vector<2x128xf32> -> vector<2x128xf32>
    %c0_40 = arith.constant 0 : index
    %c1 = arith.constant 1 : index
    %c0_41 = arith.constant 0 : index
    %c0_42 = arith.constant 0 : index
    %36 = vector.load %arg8[%c0_40, %c1, %c0_41, %c0_42] : memref<1x3x128x128xf32, #tpu.memory_space<vmem>>, vector<1x1x128x128xf32>
    %37 = vector.shape_cast %36 : vector<1x1x128x128xf32> to vector<128x128xf32>
    %cst_43 = arith.constant dense<0.000000e+00> : vector<2x128xf32>
    %38 = tpu.matmul %35, %37, %cst_43 {dimension_numbers = #tpu.dot_dimension_numbers<[1], [0], [0], [1], [0, 0, 1, 1], [], []>} : vector<2x128xf32>, vector<128x128xf32>, vector<2x128xf32> -> vector<2x128xf32>
    %c0_44 = arith.constant 0 : index
    %c1_45 = arith.constant 1 : index
    %c0_46 = arith.constant 0 : index
    %c0_47 = arith.constant 0 : index
    %39 = vector.load %arg9[%c0_44, %c1_45, %c0_46, %c0_47] : memref<1x3x1x128xf32, #tpu.memory_space<vmem>>, vector<1x1x1x128xf32>
    %40 = vector.shape_cast %39 : vector<1x1x1x128xf32> to vector<1x128xf32>
    %41 = vector.broadcast %40 : vector<1x128xf32> to vector<2x128xf32>
    %42 = arith.addf %38, %41 : vector<2x128xf32>
    %43 = arith.addf %13, %42 : vector<2x128xf32>
    "tpu.trace_start"() <{level = 10 : i32, message = "bij,bjd->bid"}> : () -> ()
    %cst_48 = arith.constant dense<0.000000e+00> : vector<2x16x128xf32>
    %44 = tpu.matmul %1, %34, %cst_48 {dimension_numbers = #tpu.dot_dimension_numbers<[2], [1], [1], [2], [0, 0, 0, 1, 1, 2], [0], [0]>} : vector<2x16x16xf32>, vector<2x16x128xf32>, vector<2x16x128xf32> -> vector<2x16x128xf32>
    "tpu.trace_stop"() : () -> ()
    %45 = vector.shape_cast %44 : vector<2x16x128xf32> to vector<32x128xf32>
    %c0_49 = arith.constant 0 : index
    %c1_50 = arith.constant 1 : index
    %c0_51 = arith.constant 0 : index
    %c0_52 = arith.constant 0 : index
    %46 = vector.load %arg4[%c0_49, %c1_50, %c0_51, %c0_52] : memref<1x2x128x128xf32, #tpu.memory_space<vmem>>, vector<1x1x128x128xf32>
    %47 = vector.shape_cast %46 : vector<1x1x128x128xf32> to vector<128x128xf32>
    %cst_53 = arith.constant dense<0.000000e+00> : vector<32x128xf32>
    %48 = tpu.matmul %45, %47, %cst_53 {dimension_numbers = #tpu.dot_dimension_numbers<[1], [0], [0], [1], [0, 0, 1, 1], [], []>} : vector<32x128xf32>, vector<128x128xf32>, vector<32x128xf32> -> vector<32x128xf32>
    %c0_54 = arith.constant 0 : index
    %c1_55 = arith.constant 1 : index
    %c0_56 = arith.constant 0 : index
    %c0_57 = arith.constant 0 : index
    %49 = vector.load %arg5[%c0_54, %c1_55, %c0_56, %c0_57] : memref<1x2x1x128xf32, #tpu.memory_space<vmem>>, vector<1x1x1x128xf32>
    %50 = vector.shape_cast %49 : vector<1x1x1x128xf32> to vector<1x128xf32>
    %51 = vector.broadcast %50 : vector<1x128xf32> to vector<32x128xf32>
    %52 = arith.addf %48, %51 : vector<32x128xf32>
    %cst_58 = arith.constant 0.000000e+00 : f32
    %53 = vector.broadcast %cst_58 : f32 to vector<32x128xf32>
    %54 = arith.maximumf %52, %53 : vector<32x128xf32>
    %c0_59 = arith.constant 0 : index
    %c1_60 = arith.constant 1 : index
    %c0_61 = arith.constant 0 : index
    %c0_62 = arith.constant 0 : index
    %55 = vector.load %arg6[%c0_59, %c1_60, %c0_61, %c0_62] : memref<1x2x128x128xf32, #tpu.memory_space<vmem>>, vector<1x1x128x128xf32>
    %56 = vector.shape_cast %55 : vector<1x1x128x128xf32> to vector<128x128xf32>
    %cst_63 = arith.constant dense<0.000000e+00> : vector<32x128xf32>
    %57 = tpu.matmul %54, %56, %cst_63 {dimension_numbers = #tpu.dot_dimension_numbers<[1], [0], [0], [1], [0, 0, 1, 1], [], []>} : vector<32x128xf32>, vector<128x128xf32>, vector<32x128xf32> -> vector<32x128xf32>
    %c0_64 = arith.constant 0 : index
    %c1_65 = arith.constant 1 : index
    %c0_66 = arith.constant 0 : index
    %c0_67 = arith.constant 0 : index
    %58 = vector.load %arg7[%c0_64, %c1_65, %c0_66, %c0_67] : memref<1x2x1x128xf32, #tpu.memory_space<vmem>>, vector<1x1x1x128xf32>
    %59 = vector.shape_cast %58 : vector<1x1x1x128xf32> to vector<1x128xf32>
    %60 = vector.broadcast %59 : vector<1x128xf32> to vector<32x128xf32>
    %61 = arith.addf %57, %60 : vector<32x128xf32>
    %cst_68 = arith.constant 0.000000e+00 : f32
    %62 = vector.broadcast %cst_68 : f32 to vector<32x128xf32>
    %63 = arith.maximumf %61, %62 : vector<32x128xf32>
    %cst_69 = arith.constant dense<0.000000e+00> : vector<2x128xf32>
    %64 = tpu.matmul %2, %63, %cst_69 {dimension_numbers = #tpu.dot_dimension_numbers<[1], [0], [0], [1], [0, 0, 1, 1], [], []>} : vector<2x32xf32>, vector<32x128xf32>, vector<2x128xf32> -> vector<2x128xf32>
    %c0_70 = arith.constant 0 : index
    %c2 = arith.constant 2 : index
    %c0_71 = arith.constant 0 : index
    %c0_72 = arith.constant 0 : index
    %65 = vector.load %arg8[%c0_70, %c2, %c0_71, %c0_72] : memref<1x3x128x128xf32, #tpu.memory_space<vmem>>, vector<1x1x128x128xf32>
    %66 = vector.shape_cast %65 : vector<1x1x128x128xf32> to vector<128x128xf32>
    %cst_73 = arith.constant dense<0.000000e+00> : vector<2x128xf32>
    %67 = tpu.matmul %64, %66, %cst_73 {dimension_numbers = #tpu.dot_dimension_numbers<[1], [0], [0], [1], [0, 0, 1, 1], [], []>} : vector<2x128xf32>, vector<128x128xf32>, vector<2x128xf32> -> vector<2x128xf32>
    %c0_74 = arith.constant 0 : index
    %c2_75 = arith.constant 2 : index
    %c0_76 = arith.constant 0 : index
    %c0_77 = arith.constant 0 : index
    %68 = vector.load %arg9[%c0_74, %c2_75, %c0_76, %c0_77] : memref<1x3x1x128xf32, #tpu.memory_space<vmem>>, vector<1x1x1x128xf32>
    %69 = vector.shape_cast %68 : vector<1x1x1x128xf32> to vector<1x128xf32>
    %70 = vector.broadcast %69 : vector<1x128xf32> to vector<2x128xf32>
    %71 = arith.addf %67, %70 : vector<2x128xf32>
    %72 = arith.addf %43, %71 : vector<2x128xf32>
    %73 = arith.mulf %72, %72 : vector<2x128xf32>
    %cst_78 = arith.constant dense<0.000000e+00> : vector<2xf32>
    %74 = vector.multi_reduction <add>, %73, %cst_78 [1] : vector<2x128xf32> to vector<2xf32>
    %75 = vector.shape_cast %74 : vector<2xf32> to vector<2x1xf32>
    %cst_79 = arith.constant 1.000000e-10 : f32
    %76 = vector.broadcast %cst_79 : f32 to vector<2x1xf32>
    %77 = arith.maximumf %75, %76 : vector<2x1xf32>
    %78 = math.rsqrt %77 : vector<2x1xf32>
    %79 = vector.broadcast %78 : vector<2x1xf32> to vector<2x128xf32>
    %80 = arith.mulf %72, %79 : vector<2x128xf32>
    %c0_80 = arith.constant 0 : index
    %c0_81 = arith.constant 0 : index
    %c0_82 = arith.constant 0 : index
    %81 = vector.load %arg10[%c0_80, %c0_81, %c0_82] : memref<1x2x128xf32, #tpu.memory_space<vmem>>, vector<1x2x128xf32>
    %82 = vector.shape_cast %81 : vector<1x2x128xf32> to vector<2x128xf32>
    %83 = vector.shape_cast %80 : vector<2x128xf32> to vector<1x2x128xf32>
    tpu.vector_store %arg10[%c0_80, %c0_81, %c0_82], %83 {strides = array<i32>} : memref<1x2x128xf32, #tpu.memory_space<vmem>>, vector<1x2x128xf32>,
    return
  }
  func.func @transform_0(%arg0: i32) -> (i32, i32, i32, i32) {
    %c0_i32 = arith.constant 0 : i32
    %c0_i32_0 = arith.constant 0 : i32
    %c0_i32_1 = arith.constant 0 : i32
    %c0_i32_2 = arith.constant 0 : i32
    return %arg0, %c0_i32, %c0_i32_0, %c0_i32_1 : i32, i32, i32, i32
  }
  func.func @transform_1(%arg0: i32) -> (i32, i32, i32, i32) {
    %c0_i32 = arith.constant 0 : i32
    %c0_i32_0 = arith.constant 0 : i32
    %c0_i32_1 = arith.constant 0 : i32
    %c0_i32_2 = arith.constant 0 : i32
    return %arg0, %c0_i32, %c0_i32_0, %c0_i32_1 : i32, i32, i32, i32
  }
  func.func @transform_2(%arg0: i32) -> (i32, i32) {
    %c0_i32 = arith.constant 0 : i32
    %c0_i32_0 = arith.constant 0 : i32
    %c0_i32_1 = arith.constant 0 : i32
    return %c0_i32, %c0_i32_0 : i32, i32
  }
  func.func @transform_3(%arg0: i32) -> (i32, i32, i32, i32) {
    %c0_i32 = arith.constant 0 : i32
    %c0_i32_0 = arith.constant 0 : i32
    %c0_i32_1 = arith.constant 0 : i32
    %c0_i32_2 = arith.constant 0 : i32
    return %arg0, %c0_i32, %c0_i32_0, %c0_i32_1 : i32, i32, i32, i32
  }
  func.func @transform_4(%arg0: i32) -> (i32, i32, i32, i32) {
    %c0_i32 = arith.constant 0 : i32
    %c0_i32_0 = arith.constant 0 : i32
    %c0_i32_1 = arith.constant 0 : i32
    %c0_i32_2 = arith.constant 0 : i32
    return %arg0, %c0_i32, %c0_i32_0, %c0_i32_1 : i32, i32, i32, i32
  }
  func.func @transform_5(%arg0: i32) -> (i32, i32, i32, i32) {
    %c0_i32 = arith.constant 0 : i32
    %c0_i32_0 = arith.constant 0 : i32
    %c0_i32_1 = arith.constant 0 : i32
    %c0_i32_2 = arith.constant 0 : i32
    return %arg0, %c0_i32, %c0_i32_0, %c0_i32_1 : i32, i32, i32, i32
  }
  func.func @transform_6(%arg0: i32) -> (i32, i32, i32, i32) {
    %c0_i32 = arith.constant 0 : i32
    %c0_i32_0 = arith.constant 0 : i32
    %c0_i32_1 = arith.constant 0 : i32
    %c0_i32_2 = arith.constant 0 : i32
    return %arg0, %c0_i32, %c0_i32_0, %c0_i32_1 : i32, i32, i32, i32
  }
  func.func @transform_7(%arg0: i32) -> (i32, i32, i32, i32) {
    %c0_i32 = arith.constant 0 : i32
    %c0_i32_0 = arith.constant 0 : i32
    %c0_i32_1 = arith.constant 0 : i32
    %c0_i32_2 = arith.constant 0 : i32
    return %arg0, %c0_i32, %c0_i32_0, %c0_i32_1 : i32, i32, i32, i32
  }
  func.func @transform_8(%arg0: i32) -> (i32, i32, i32, i32) {
    %c0_i32 = arith.constant 0 : i32
    %c0_i32_0 = arith.constant 0 : i32
    %c0_i32_1 = arith.constant 0 : i32
    %c0_i32_2 = arith.constant 0 : i32
    return %arg0, %c0_i32, %c0_i32_0, %c0_i32_1 : i32, i32, i32, i32
  }
  func.func @transform_9(%arg0: i32) -> (i32, i32, i32) {
    %c0_i32 = arith.constant 0 : i32
    %c0_i32_0 = arith.constant 0 : i32
    %c0_i32_1 = arith.constant 0 : i32
    return %arg0, %c0_i32, %c0_i32_0 : i32, i32, i32
  }
}

</mosaic_0001>

<llo_original>
// kernel: hete_graph_encoder_forward.3
$region0: #{hete_graph_encoder_forward.3}
  #allocation0 [shape = 'u32[]', space=smem, size = 0x4, offset = 0x4, fixed_abs, tag = 'smem constant byte address 0x4 - core index']
  #allocation1 [shape = 'u32[144,128]{1,0:T(1,128)}', space=vmem, size = 0x12000, scoped, tag = 'internal scratch']
  %s0 = inlined_call_operand.vmem [shape: f32[2,2,128], index: 0, kind: input, shape index: {}]
  %s1 = inlined_call_operand.vmem [shape: f32[2,128,128], index: 1, kind: input, shape index: {}]
  %s2 = inlined_call_operand.vmem [shape: f32[2,1,128], index: 2, kind: input, shape index: {}]
  %s3 = inlined_call_operand.vmem [shape: f32[2,128,128], index: 3, kind: input, shape index: {}]
  %s4 = inlined_call_operand.vmem [shape: f32[2,1,128], index: 4, kind: input, shape index: {}]
  %s5 = inlined_call_operand.vmem [shape: f32[2,2,128], index: 5, kind: output, shape index: {}]
  %s6 = sld [smem:[#allocation0]]
  $region53: #{hete_graph_encoder_forward.3} parent=0
    _
  %s8 = ssub.s32 1, %s6
  %s9 = scalar_select 0, %s8, %s6
  loop: start=0, step=1, limit=4
  $region2: #{hete_graph_encoder_forward.3} parent=0 // loop_pre_header
    _
  $region3: #{hete_graph_encoder_forward.3} parent=0 // loop_header
    %s11 = sphi 0, %s15
    %p12 = scmp.ge.s32.totalorder %s11, 4
    %s21 = sphi 0, %s23
    %s24 = sphi 0, %s21
    %s25 = sphi 0, %s24
    %s41 = sphi 0, %s25
    %s47 = sphi 0, %s49
    %s50 = sphi 0, %s47
    %s51 = sphi 0, %s50
    %s67 = sphi 0, %s51
    %s73 = sphi 0, %s75
    %s76 = sphi 0, %s73
    %s77 = sphi 0, %s76
    %s93 = sphi 0, %s77
    %s99 = sphi 0, %s101
    %s102 = sphi 0, %s99
    %s103 = sphi 0, %s102
    %s119 = sphi 0, %s103
    %s125 = sphi 0, %s127
    %s128 = sphi 0, %s125
    %s129 = sphi 0, %s128
    %s145 = sphi 0, %s129
    %s151 = sphi 0, %s153
    %s154 = sphi 0, %s151
    %s155 = sphi 0, %s154
    %s171 = sphi 0, %s155
  $region4: #{hete_graph_encoder_forward.3} parent=0 // loop_header_branch
    %14 = sbr.rel (%p12) target = $region8
  $region5: #{hete_graph_encoder_forward.3} parent=0 // loop_body
    %s16 = ssub.s32 %s11, 1
    %s17 = ssub.s32 %s11, 2
    %s18 = sadd.s32 %s11, 1
    %s19 = ssub.s32 %s11, %s18
    %p20 = scmp.eq.s32.totalorder %s19, 0
    %s22 = sadd.s32 %s21, 1
    %s23 = scalar_select %p20, %s21, %s22
    %p26 = pneg %p20
    %p27 = scmp.eq.s32.totalorder %s11, 1
    %p28 = por %p26, %p27
    %p29 = scmp.ne.s32.totalorder %s21, %s24
    %p30 = scmp.eq.s32.totalorder %s11, 0
    %p31 = por %p29, %p30
    %p32 = scmp.ne.s32.totalorder %s21, %s24
    %p33 = scmp.eq.s32.totalorder %s16, 1
    %p34 = por %p32, %p33
    %p35 = scmp.ne.s32.totalorder %s24, %s25
    %p36 = scmp.eq.s32.totalorder %s16, 0
    %p37 = por %p35, %p36
    %p38 = scmp.ne.s32.totalorder %s24, %s25
    %p39 = scmp.eq.s32.totalorder %s17, 1
    %p40 = por %p38, %p39
    %p42 = scmp.ne.s32.totalorder %s25, %s41
    %p43 = scmp.eq.s32.totalorder %s17, 0
    %p44 = por %p42, %p43
    %s45 = ssub.s32 %s11, %s18
    %p46 = scmp.eq.s32.totalorder %s45, 0
    %s48 = sadd.s32 %s47, 1
    %s49 = scalar_select %p46, %s47, %s48
    %p52 = pneg %p46
    %p53 = scmp.eq.s32.totalorder %s11, 1
    %p54 = por %p52, %p53
    %p55 = scmp.ne.s32.totalorder %s47, %s50
    %p56 = scmp.eq.s32.totalorder %s11, 0
    %p57 = por %p55, %p56
    %p58 = scmp.ne.s32.totalorder %s47, %s50
    %p59 = scmp.eq.s32.totalorder %s16, 1
    %p60 = por %p58, %p59
    %p61 = scmp.ne.s32.totalorder %s50, %s51
    %p62 = scmp.eq.s32.totalorder %s16, 0
    %p63 = por %p61, %p62
    %p64 = scmp.ne.s32.totalorder %s50, %s51
    %p65 = scmp.eq.s32.totalorder %s17, 1
    %p66 = por %p64, %p65
    %p68 = scmp.ne.s32.totalorder %s51, %s67
    %p69 = scmp.eq.s32.totalorder %s17, 0
    %p70 = por %p68, %p69
    %s71 = ssub.s32 %s11, %s18
    %p72 = scmp.eq.s32.totalorder %s71, 0
    %s74 = sadd.s32 %s73, 1
    %s75 = scalar_select %p72, %s73, %s74
    %p78 = pneg %p72
    %p79 = scmp.eq.s32.totalorder %s11, 1
    %p80 = por %p78, %p79
    %p81 = scmp.ne.s32.totalorder %s73, %s76
    %p82 = scmp.eq.s32.totalorder %s11, 0
    %p83 = por %p81, %p82
    %p84 = scmp.ne.s32.totalorder %s73, %s76
    %p85 = scmp.eq.s32.totalorder %s16, 1
    %p86 = por %p84, %p85
    %p87 = scmp.ne.s32.totalorder %s76, %s77
    %p88 = scmp.eq.s32.totalorder %s16, 0
    %p89 = por %p87, %p88
    %p90 = scmp.ne.s32.totalorder %s76, %s77
    %p91 = scmp.eq.s32.totalorder %s17, 1
    %p92 = por %p90, %p91
    %p94 = scmp.ne.s32.totalorder %s77, %s93
    %p95 = scmp.eq.s32.totalorder %s17, 0
    %p96 = por %p94, %p95
    %s97 = ssub.s32 %s11, %s18
    %p98 = scmp.eq.s32.totalorder %s97, 0
    %s100 = sadd.s32 %s99, 1
    %s101 = scalar_select %p98, %s99, %s100
    %p104 = pneg %p98
    %p105 = scmp.eq.s32.totalorder %s11, 1
    %p106 = por %p104, %p105
    %p107 = scmp.ne.s32.totalorder %s99, %s102
    %p108 = scmp.eq.s32.totalorder %s11, 0
    %p109 = por %p107, %p108
    %p110 = scmp.ne.s32.totalorder %s99, %s102
    %p111 = scmp.eq.s32.totalorder %s16, 1
    %p112 = por %p110, %p111
    %p113 = scmp.ne.s32.totalorder %s102, %s103
    %p114 = scmp.eq.s32.totalorder %s16, 0
    %p115 = por %p113, %p114
    %p116 = scmp.ne.s32.totalorder %s102, %s103
    %p117 = scmp.eq.s32.totalorder %s17, 1
    %p118 = por %p116, %p117
    %p120 = scmp.ne.s32.totalorder %s103, %s119
    %p121 = scmp.eq.s32.totalorder %s17, 0
    %p122 = por %p120, %p121
    %s123 = ssub.s32 %s11, %s18
    %p124 = scmp.eq.s32.totalorder %s123, 0
    %s126 = sadd.s32 %s125, 1
    %s127 = scalar_select %p124, %s125, %s126
    %p130 = pneg %p124
    %p131 = scmp.eq.s32.totalorder %s11, 1
    %p132 = por %p130, %p131
    %p133 = scmp.ne.s32.totalorder %s125, %s128
    %p134 = scmp.eq.s32.totalorder %s11, 0
    %p135 = por %p133, %p134
    %p136 = scmp.ne.s32.totalorder %s125, %s128
    %p137 = scmp.eq.s32.totalorder %s16, 1
    %p138 = por %p136, %p137
    %p139 = scmp.ne.s32.totalorder %s128, %s129
    %p140 = scmp.eq.s32.totalorder %s16, 0
    %p141 = por %p139, %p140
    %p142 = scmp.ne.s32.totalorder %s128, %s129
    %p143 = scmp.eq.s32.totalorder %s17, 1
    %p144 = por %p142, %p143
    %p146 = scmp.ne.s32.totalorder %s129, %s145
    %p147 = scmp.eq.s32.totalorder %s17, 0
    %p148 = por %p146, %p147
    %s149 = ssub.s32 %s11, %s18
    %p150 = scmp.eq.s32.totalorder %s149, 0
    %s152 = sadd.s32 %s151, 1
    %s153 = scalar_select %p150, %s151, %s152
    %p156 = pneg %p150
    %p157 = scmp.eq.s32.totalorder %s11, 1
    %p158 = por %p156, %p157
    %p159 = scmp.ne.s32.totalorder %s151, %s154
    %p160 = scmp.eq.s32.totalorder %s11, 0
    %p161 = por %p159, %p160
    %p162 = scmp.ne.s32.totalorder %s151, %s154
    %p163 = scmp.eq.s32.totalorder %s16, 1
    %p164 = por %p162, %p163
    %p165 = scmp.ne.s32.totalorder %s154, %s155
    %p166 = scmp.eq.s32.totalorder %s16, 0
    %p167 = por %p165, %p166
    %p168 = scmp.ne.s32.totalorder %s154, %s155
    %p169 = scmp.eq.s32.totalorder %s17, 1
    %p170 = por %p168, %p169
    %p172 = scmp.ne.s32.totalorder %s155, %s171
    %p173 = scmp.eq.s32.totalorder %s17, 0
    %p174 = por %p172, %p173
    %p175 = scmp.le.s32.totalorder 1, %s11
    %p176 = scmp.lt.s32.totalorder %s11, 3
    %p177 = pnand %p175, %p176
    %p178 = pneg %p177
    // Predicated region
    $region9: #{hete_graph_encoder_forward.3} parent=5 // pred_check
      _
    $region10: #{hete_graph_encoder_forward.3} parent=5 // pred_check_branch
      %180 = sbr.rel (%p177) target = $region12
    $region11: #{hete_graph_encoder_forward.3} parent=5 // pred_region
      %s181 = ssub.s32 %s11, 1
    $region12: #{hete_graph_encoder_forward.3} parent=5 // pred_fallthru
      _
    %p182 = scmp.lt.s32.totalorder %s11, 2
    // Predicated region
    $region13: #{hete_graph_encoder_forward.3} parent=5 // pred_check
      %p183 = pneg %p182
    $region14: #{hete_graph_encoder_forward.3} parent=5 // pred_check_branch
      %185 = sbr.rel (%p183) target = $region16
    $region15: #{hete_graph_encoder_forward.3} parent=5 // pred_region
      // Predicated region
      $region17: #{hete_graph_encoder_forward.3} parent=15 // pred_check
        %p186 = pneg %p31
      $region18: #{hete_graph_encoder_forward.3} parent=15 // pred_check_branch
        %188 = sbr.rel (%p186) target = $region20
      $region19: #{hete_graph_encoder_forward.3} parent=15 // pred_region
        %p189 = scmp.lt.s32.totalorder %s11, 1
        %s190 = scalar_select %p189, %s11, 1
        %s191 = smul.addr %s190, 2
        %s192 = scalar_lea.vmem %s0, %s191
      $region20: #{hete_graph_encoder_forward.3} parent=15 // pred_fallthru
        _
      // Predicated region
      $region21: #{hete_graph_encoder_forward.3} parent=15 // pred_check
        %p193 = pneg %p57
      $region22: #{hete_graph_encoder_forward.3} parent=15 // pred_check_branch
        %195 = sbr.rel (%p193) target = $region24
      $region23: #{hete_graph_encoder_forward.3} parent=15 // pred_region
        %p196 = scmp.lt.s32.totalorder %s11, 1
        %s197 = scalar_select %p196, %s11, 1
        %s198 = smul.addr %s197, 16
        %s199 = smul.addr %s198, 8
        %s200 = scalar_lea.vmem %s1, %s199
      $region24: #{hete_graph_encoder_forward.3} parent=15 // pred_fallthru
        _
      // Predicated region
      $region25: #{hete_graph_encoder_forward.3} parent=15 // pred_check
        %p201 = pneg %p83
      $region26: #{hete_graph_encoder_forward.3} parent=15 // pred_check_branch
        %203 = sbr.rel (%p201) target = $region28
      $region27: #{hete_graph_encoder_forward.3} parent=15 // pred_region
        %p204 = scmp.lt.s32.totalorder %s11, 1
        %s205 = scalar_select %p204, %s11, 1
        %s206 = scalar_lea.vmem %s2, %s205
      $region28: #{hete_graph_encoder_forward.3} parent=15 // pred_fallthru
        _
      // Predicated region
      $region29: #{hete_graph_encoder_forward.3} parent=15 // pred_check
        %p207 = pneg %p109
      $region30: #{hete_graph_encoder_forward.3} parent=15 // pred_check_branch
        %209 = sbr.rel (%p207) target = $region32
      $region31: #{hete_graph_encoder_forward.3} parent=15 // pred_region
        %p210 = scmp.lt.s32.totalorder %s11, 1
        %s211 = scalar_select %p210, %s11, 1
        %s212 = smul.addr %s211, 16
        %s213 = smul.addr %s212, 8
        %s214 = scalar_lea.vmem %s3, %s213
      $region32: #{hete_graph_encoder_forward.3} parent=15 // pred_fallthru
        _
      // Predicated region
      $region33: #{hete_graph_encoder_forward.3} parent=15 // pred_check
        %p215 = pneg %p135
      $region34: #{hete_graph_encoder_forward.3} parent=15 // pred_check_branch
        %217 = sbr.rel (%p215) target = $region36
      $region35: #{hete_graph_encoder_forward.3} parent=15 // pred_region
        %p218 = scmp.lt.s32.totalorder %s11, 1
        %s219 = scalar_select %p218, %s11, 1
        %s220 = scalar_lea.vmem %s4, %s219
      $region36: #{hete_graph_encoder_forward.3} parent=15 // pred_fallthru
        _
    $region16: #{hete_graph_encoder_forward.3} parent=5 // pred_fallthru
      _
    %p221 = scmp.le.s32.totalorder 1, %s11
    %p222 = scmp.lt.s32.totalorder %s11, 3
    %p223 = pnand %p221, %p222
    %p224 = pneg %p223
    // Predicated region
    $region37: #{hete_graph_encoder_forward.3} parent=5 // pred_check
      _
    $region38: #{hete_graph_encoder_forward.3} parent=5 // pred_check_branch
      %226 = sbr.rel (%p223) target = $region40
    $region39: #{hete_graph_encoder_forward.3} parent=5 // pred_region
      %s227 = ssub.s32 %s11, 1
      %p228 = scmp.lt.s32.totalorder %s16, 1
      %s229 = scalar_select %p228, %s16, 1
      %s230 = smul.addr %s229, 2
      %s231 = scalar_lea.vmem %s0, %s230
      %p232 = pneg %p37
      %p233 = pneg %p34
      %p234 = scmp.lt.s32.totalorder %s16, 1
      %s235 = scalar_select %p234, %s16, 1
      %s236 = smul.addr %s235, 16
      %s237 = smul.addr %s236, 8
      %s238 = scalar_lea.vmem %s1, %s237
      %p239 = pneg %p63
      %p240 = pneg %p60
      %p241 = scmp.lt.s32.totalorder %s16, 1
      %s242 = scalar_select %p241, %s16, 1
      %s243 = scalar_lea.vmem %s2, %s242
      %p244 = pneg %p89
      %p245 = pneg %p86
      %p246 = scmp.lt.s32.totalorder %s16, 1
      %s247 = scalar_select %p246, %s16, 1
      %s248 = smul.addr %s247, 16
      %s249 = smul.addr %s248, 8
      %s250 = scalar_lea.vmem %s3, %s249
      %p251 = pneg %p115
      %p252 = pneg %p112
      %p253 = scmp.lt.s32.totalorder %s16, 1
      %s254 = scalar_select %p253, %s16, 1
      %s255 = scalar_lea.vmem %s4, %s254
      %p256 = pneg %p141
      %p257 = pneg %p138
      %p258 = pneg %p167
      %p259 = pneg %p164
      %p260 = scmp.lt.s32.totalorder %s16, 1
      %s261 = scalar_select %p260, %s16, 1
      %s262 = smul.addr %s261, 2
      %s263 = scalar_lea.vmem %s5, %s262
      %p264 = scmp.lt.s32.totalorder %s16, 1
      %s265 = scalar_select %p264, %s16, 1
      %s266 = smul.addr %s265, 2
      %s267 = scalar_lea.vmem %s0, %s266
      %p268 = scmp.lt.s32.totalorder %s16, 1
      %s269 = scalar_select %p268, %s16, 1
      %s270 = smul.addr %s269, 16
      %s271 = smul.addr %s270, 8
      %s272 = scalar_lea.vmem %s1, %s271
      %p273 = scmp.lt.s32.totalorder %s16, 1
      %s274 = scalar_select %p273, %s16, 1
      %s275 = scalar_lea.vmem %s2, %s274
      %p276 = scmp.lt.s32.totalorder %s16, 1
      %s277 = scalar_select %p276, %s16, 1
      %s278 = smul.addr %s277, 16
      %s279 = smul.addr %s278, 8
      %s280 = scalar_lea.vmem %s3, %s279
      %p281 = scmp.lt.s32.totalorder %s16, 1
      %s282 = scalar_select %p281, %s16, 1
      %s283 = scalar_lea.vmem %s4, %s282
      %p284 = scmp.lt.s32.totalorder %s16, 1
      %s285 = scalar_select %p284, %s16, 1
      %s286 = smul.addr %s285, 2
      %s287 = scalar_lea.vmem %s5, %s286
      %v288 = vld [vmem:[%s267] sm:$0x3]
      %v289 = vld [vmem:[%s272] sm:$0xff]
      %v290 = vld [vmem:[%s272 + $0x8] sm:$0xff]
      %v291 = vld [vmem:[%s272 + $0x10] sm:$0xff]
      %v292 = vld [vmem:[%s272 + $0x18] sm:$0xff]
      %v293 = vld [vmem:[%s272 + $0x20] sm:$0xff]
      %v294 = vld [vmem:[%s272 + $0x28] sm:$0xff]
      %v295 = vld [vmem:[%s272 + $0x30] sm:$0xff]
      %v296 = vld [vmem:[%s272 + $0x38] sm:$0xff]
      %v297 = vld [vmem:[%s272 + $0x40] sm:$0xff]
      %v298 = vld [vmem:[%s272 + $0x48] sm:$0xff]
      %v299 = vld [vmem:[%s272 + $0x50] sm:$0xff]
      %v300 = vld [vmem:[%s272 + $0x58] sm:$0xff]
      %v301 = vld [vmem:[%s272 + $0x60] sm:$0xff]
      %v302 = vld [vmem:[%s272 + $0x68] sm:$0xff]
      %v303 = vld [vmem:[%s272 + $0x70] sm:$0xff]
      %v304 = vld [vmem:[%s272 + $0x78] sm:$0xff]
      %v305 = vld [vmem:[%s275] sm:$0x1]
      %v307 = vlaneseq
      %v308 = vshrl.u32 %v307, 7
      %v309 = vsub.s32 0, %v308
      %v310 = vrot.slane %v305, %v309
      %312 = vmatprep.subr.mxu0 0.0
      %313 = vmatpush1.msra.mxu0 %v304
      %314 = vmatprep.subr.mxu0 0.0
      %315 = vmatpush1.msra.mxu0 %v303
      %316 = vmatprep.subr.mxu0 0.0
      %317 = vmatpush1.msra.mxu0 %v302
      %318 = vmatprep.subr.mxu0 0.0
      %319 = vmatpush1.msra.mxu0 %v301
      %320 = vmatprep.subr.mxu0 0.0
      %321 = vmatpush1.msra.mxu0 %v300
      %322 = vmatprep.subr.mxu0 0.0
      %323 = vmatpush1.msra.mxu0 %v299
      %324 = vmatprep.subr.mxu0 0.0
      %325 = vmatpush1.msra.mxu0 %v298
      %326 = vmatprep.subr.mxu0 0.0
      %327 = vmatpush1.msra.mxu0 %v297
      %328 = vmatprep.subr.mxu0 0.0
      %329 = vmatpush1.msra.mxu0 %v296
      %330 = vmatprep.subr.mxu0 0.0
      %331 = vmatpush1.msra.mxu0 %v295
      %332 = vmatprep.subr.mxu0 0.0
      %333 = vmatpush1.msra.mxu0 %v294
      %334 = vmatprep.subr.mxu0 0.0
      %335 = vmatpush1.msra.mxu0 %v293
      %336 = vmatprep.subr.mxu0 0.0
      %337 = vmatpush1.msra.mxu0 %v292
      %338 = vmatprep.subr.mxu0 0.0
      %339 = vmatpush1.msra.mxu0 %v291
      %340 = vmatprep.subr.mxu0 0.0
      %341 = vmatpush1.msra.mxu0 %v290
      %342 = vmatprep.subr.mxu0 0.0
      %343 = vmatpush1.msra.mxu0 %v289
      %344 = vmatprep.subr.mxu0 0.0
      %345 = vmatpush2.msra.mxu0 0.0
      %346 = vmatprep.subr.mxu0 0.0
      %347 = vmatpush2.msra.mxu0 0.0
      %348 = vmatprep.subr.mxu0 0.0
      %349 = vmatpush2.msra.mxu0 0.0
      %350 = vmatprep.subr.mxu0 0.0
      %351 = vmatpush2.msra.mxu0 0.0
      %352 = vmatprep.subr.mxu0 0.0
      %353 = vmatpush2.msra.mxu0 0.0
      %354 = vmatprep.subr.mxu0 0.0
      %355 = vmatpush2.msra.mxu0 0.0
      %356 = vmatprep.subr.mxu0 0.0
      %357 = vmatpush2.msra.mxu0 0.0
      %358 = vmatprep.subr.mxu0 0.0
      %359 = vmatpush2.msra.mxu0 0.0
      %360 = vmatprep.subr.mxu0 0.0
      %361 = vmatpush2.msra.mxu0 0.0
      %362 = vmatprep.subr.mxu0 0.0
      %363 = vmatpush2.msra.mxu0 0.0
      %364 = vmatprep.subr.mxu0 0.0
      %365 = vmatpush2.msra.mxu0 0.0
      %366 = vmatprep.subr.mxu0 0.0
      %367 = vmatpush2.msra.mxu0 0.0
      %368 = vmatprep.subr.mxu0 0.0
      %369 = vmatpush2.msra.mxu0 0.0
      %370 = vmatprep.subr.mxu0 0.0
      %371 = vmatpush2.msra.mxu0 0.0
      %372 = vmatprep.subr.mxu0 0.0
      %373 = vmatpush2.msra.mxu0 0.0
      %374 = vmatprep.subr.mxu0 0.0
      %375 = vmatpush2.msra.mxu0 0.0
      %376 = vmatprep.mubr.f32.mxu0 0.0
      %377 = vmatmul.mubr.f32.gmra.mxu0 %v288
      %v378 = vpop.f32.mrf.mxu0
      %v379 = vadd.f32 %v310, %v378
      %v380 = vpop.f32.mrf.mxu0
      %381 = vdwg.mxu0
      %v382 = vmax.f32 %v379, 0.0
      %v383 = vld [vmem:[%s280] sm:$0xff]
      %v384 = vld [vmem:[%s280 + $0x8] sm:$0xff]
      %v385 = vld [vmem:[%s280 + $0x10] sm:$0xff]
      %v386 = vld [vmem:[%s280 + $0x18] sm:$0xff]
      %v387 = vld [vmem:[%s280 + $0x20] sm:$0xff]
      %v388 = vld [vmem:[%s280 + $0x28] sm:$0xff]
      %v389 = vld [vmem:[%s280 + $0x30] sm:$0xff]
      %v390 = vld [vmem:[%s280 + $0x38] sm:$0xff]
      %v391 = vld [vmem:[%s280 + $0x40] sm:$0xff]
      %v392 = vld [vmem:[%s280 + $0x48] sm:$0xff]
      %v393 = vld [vmem:[%s280 + $0x50] sm:$0xff]
      %v394 = vld [vmem:[%s280 + $0x58] sm:$0xff]
      %v395 = vld [vmem:[%s280 + $0x60] sm:$0xff]
      %v396 = vld [vmem:[%s280 + $0x68] sm:$0xff]
      %v397 = vld [vmem:[%s280 + $0x70] sm:$0xff]
      %v398 = vld [vmem:[%s280 + $0x78] sm:$0xff]
      %v399 = vld [vmem:[%s283] sm:$0x1]
      %v401 = vlaneseq
      %v402 = vshrl.u32 %v401, 7
      %v403 = vsub.s32 0, %v402
      %v404 = vrot.slane %v399, %v403
      %406 = vmatprep.subr.mxu0 0.0
      %407 = vmatpush1.msra.mxu0 %v398
      %408 = vmatprep.subr.mxu0 0.0
      %409 = vmatpush1.msra.mxu0 %v397
      %410 = vmatprep.subr.mxu0 0.0
      %411 = vmatpush1.msra.mxu0 %v396
      %412 = vmatprep.subr.mxu0 0.0
      %413 = vmatpush1.msra.mxu0 %v395
      %414 = vmatprep.subr.mxu0 0.0
      %415 = vmatpush1.msra.mxu0 %v394
      %416 = vmatprep.subr.mxu0 0.0
      %417 = vmatpush1.msra.mxu0 %v393
      %418 = vmatprep.subr.mxu0 0.0
      %419 = vmatpush1.msra.mxu0 %v392
      %420 = vmatprep.subr.mxu0 0.0
      %421 = vmatpush1.msra.mxu0 %v391
      %422 = vmatprep.subr.mxu0 0.0
      %423 = vmatpush1.msra.mxu0 %v390
      %424 = vmatprep.subr.mxu0 0.0
      %425 = vmatpush1.msra.mxu0 %v389
      %426 = vmatprep.subr.mxu0 0.0
      %427 = vmatpush1.msra.mxu0 %v388
      %428 = vmatprep.subr.mxu0 0.0
      %429 = vmatpush1.msra.mxu0 %v387
      %430 = vmatprep.subr.mxu0 0.0
      %431 = vmatpush1.msra.mxu0 %v386
      %432 = vmatprep.subr.mxu0 0.0
      %433 = vmatpush1.msra.mxu0 %v385
      %434 = vmatprep.subr.mxu0 0.0
      %435 = vmatpush1.msra.mxu0 %v384
      %436 = vmatprep.subr.mxu0 0.0
      %437 = vmatpush1.msra.mxu0 %v383
      %438 = vmatprep.subr.mxu0 0.0
      %439 = vmatpush2.msra.mxu0 0.0
      %440 = vmatprep.subr.mxu0 0.0
      %441 = vmatpush2.msra.mxu0 0.0
      %442 = vmatprep.subr.mxu0 0.0
      %443 = vmatpush2.msra.mxu0 0.0
      %444 = vmatprep.subr.mxu0 0.0
      %445 = vmatpush2.msra.mxu0 0.0
      %446 = vmatprep.subr.mxu0 0.0
      %447 = vmatpush2.msra.mxu0 0.0
      %448 = vmatprep.subr.mxu0 0.0
      %449 = vmatpush2.msra.mxu0 0.0
      %450 = vmatprep.subr.mxu0 0.0
      %451 = vmatpush2.msra.mxu0 0.0
      %452 = vmatprep.subr.mxu0 0.0
      %453 = vmatpush2.msra.mxu0 0.0
      %454 = vmatprep.subr.mxu0 0.0
      %455 = vmatpush2.msra.mxu0 0.0
      %456 = vmatprep.subr.mxu0 0.0
      %457 = vmatpush2.msra.mxu0 0.0
      %458 = vmatprep.subr.mxu0 0.0
      %459 = vmatpush2.msra.mxu0 0.0
      %460 = vmatprep.subr.mxu0 0.0
      %461 = vmatpush2.msra.mxu0 0.0
      %462 = vmatprep.subr.mxu0 0.0
      %463 = vmatpush2.msra.mxu0 0.0
      %464 = vmatprep.subr.mxu0 0.0
      %465 = vmatpush2.msra.mxu0 0.0
      %466 = vmatprep.subr.mxu0 0.0
      %467 = vmatpush2.msra.mxu0 0.0
      %468 = vmatprep.subr.mxu0 0.0
      %469 = vmatpush2.msra.mxu0 0.0
      %470 = vmatprep.mubr.f32.mxu0 0.0
      %471 = vmatmul.mubr.f32.gmra.mxu0 %v382
      %v472 = vpop.f32.mrf.mxu0
      %v473 = vadd.f32 %v404, %v472
      %v474 = vpop.f32.mrf.mxu0
      %475 = vdwg.mxu0
      %476 = vst [vmem:[%s287] sm:$0x3] %v473
      %p477 = scmp.lt.s32.totalorder %s16, 1
      %s478 = scalar_select %p477, %s16, 1
      %s479 = smul.addr %s478, 2
      %s480 = scalar_lea.vmem %s5, %s479
      // Predicated region
      $region41: #{hete_graph_encoder_forward.3} parent=39 // pred_check
        %p481 = pneg %p164
      $region42: #{hete_graph_encoder_forward.3} parent=39 // pred_check_branch
        %483 = sbr.rel (%p481) target = $region44
      $region43: #{hete_graph_encoder_forward.3} parent=39 // pred_region
        _
      $region44: #{hete_graph_encoder_forward.3} parent=39 // pred_fallthru
        _
    $region40: #{hete_graph_encoder_forward.3} parent=5 // pred_fallthru
      _
    %p484 = scmp.le.s32.totalorder 2, %s11
    // Predicated region
    $region45: #{hete_graph_encoder_forward.3} parent=5 // pred_check
      %p485 = pneg %p484
    $region46: #{hete_graph_encoder_forward.3} parent=5 // pred_check_branch
      %487 = sbr.rel (%p485) target = $region48
    $region47: #{hete_graph_encoder_forward.3} parent=5 // pred_region
      %s488 = ssub.s32 %s11, 2
      // Predicated region
      $region49: #{hete_graph_encoder_forward.3} parent=47 // pred_check
        %p489 = pneg %p170
      $region50: #{hete_graph_encoder_forward.3} parent=47 // pred_check_branch
        %491 = sbr.rel (%p489) target = $region52
      $region51: #{hete_graph_encoder_forward.3} parent=47 // pred_region
        %p492 = scmp.lt.s32.totalorder %s17, 1
        %s493 = scalar_select %p492, %s17, 1
        %s494 = smul.addr %s493, 2
        %s495 = scalar_lea.vmem %s5, %s494
      $region52: #{hete_graph_encoder_forward.3} parent=47 // pred_fallthru
        _
    $region48: #{hete_graph_encoder_forward.3} parent=5 // pred_fallthru
      _
  $region6: #{hete_graph_encoder_forward.3} parent=0 // loop_footer
    %s15 = sadd.s32 1, %s11
  $region7: #{hete_graph_encoder_forward.3} parent=0 // loop_footer_branch
    %10 = sbr.rel target = $region3
  $region8: #{hete_graph_encoder_forward.3} parent=0 // loop_exit
    _

// kernel: hete_graph_encoder_forward.2
$region0: #{hete_graph_encoder_forward.2}
  #allocation0 [shape = 'u32[]', space=smem, size = 0x4, offset = 0x4, fixed_abs, tag = 'smem constant byte address 0x4 - core index']
  #allocation1 [shape = 'u32[144,128]{1,0:T(1,128)}', space=vmem, size = 0x12000, scoped, tag = 'internal scratch']
  %s0 = inlined_call_operand.hbm [shape: f32[2,2,16,16], index: 0, kind: input, shape index: {}]
  %s1 = inlined_call_operand.hbm [shape: f32[2,2,16,128], index: 1, kind: input, shape index: {}]
  %s2 = inlined_call_operand.vmem [shape: f32[2,32], index: 2, kind: input, shape index: {}]
  %s3 = inlined_call_operand.hbm [shape: f32[2,2,128,128], index: 3, kind: input, shape index: {}]
  %s4 = inlined_call_operand.hbm [shape: f32[2,2,1,128], index: 4, kind: input, shape index: {}]
  %s5 = inlined_call_operand.hbm [shape: f32[2,2,128,128], index: 5, kind: input, shape index: {}]
  %s6 = inlined_call_operand.hbm [shape: f32[2,2,1,128], index: 6, kind: input, shape index: {}]
  %s7 = inlined_call_operand.hbm [shape: f32[2,3,128,128], index: 7, kind: input, shape index: {}]
  %s8 = inlined_call_operand.hbm [shape: f32[2,3,1,128], index: 8, kind: input, shape index: {}]
  %s9 = inlined_call_operand.vmem [shape: f32[2,2,128], index: 9, kind: output, shape index: {}]
  %s10 = sld [smem:[#allocation0]]
  $region101: #{hete_graph_encoder_forward.2} parent=0
    _
  %s12 = ssub.s32 1, %s10
  %s13 = scalar_select 0, %s12, %s10
  $region1: #{hete_graph_encoder_forward.2} parent=0
    #allocation2 [shape = 'u8[32768]{0}', space=vmem, size = 0x8000, scoped, tag = 'input window, operand 0']
    #allocation3 [shape = 's32[2]{0}', space=sflag, size = 0x8, scoped, tag = 'scoped memory for hete_graph_encoder_forward.2']
    #allocation4 [shape = 'u8[32768]{0}', space=vmem, size = 0x8000, scoped, tag = 'input window, operand 1']
    #allocation5 [shape = 's32[2]{0}', space=sflag, size = 0x8, scoped, tag = 'scoped memory for hete_graph_encoder_forward.2']
    #allocation6 [shape = 'u8[262144]{0}', space=vmem, size = 0x40000, scoped, tag = 'input window, operand 3']
    #allocation7 [shape = 'u8[2048]{0}', space=vmem, size = 0x800, scoped, tag = 'input window, operand 4']
    #allocation8 [shape = 's32[2]{0}', space=sflag, size = 0x8, scoped, tag = 'scoped memory for hete_graph_encoder_forward.2']
    #allocation9 [shape = 'u8[262144]{0}', space=vmem, size = 0x40000, scoped, tag = 'input window, operand 5']
    #allocation10 [shape = 'u8[2048]{0}', space=vmem, size = 0x800, scoped, tag = 'input window, operand 6']
    #allocation11 [shape = 's32[2]{0}', space=sflag, size = 0x8, scoped, tag = 'scoped memory for hete_graph_encoder_forward.2']
    #allocation12 [shape = 'u8[393216]{0}', space=vmem, size = 0x60000, scoped, tag = 'input window, operand 7']
    #allocation13 [shape = 'u8[3072]{0}', space=vmem, size = 0xc00, scoped, tag = 'input window, operand 8']
    #allocation14 [shape = 's32[2]{0}', space=sflag, size = 0x8, scoped, tag = 'scoped memory for hete_graph_encoder_forward.2']
    %14 = vsyncpa [#allocation3], 0
    %s15 = scalar_lea.sflag [#allocation3], 1
    %16 = vsyncpa %s15, 0
    %17 = vsyncpa [#allocation5], 0
    %s18 = scalar_lea.sflag [#allocation5], 1
    %19 = vsyncpa %s18, 0
    %20 = vsyncpa [#allocation8], 0
    %s21 = scalar_lea.sflag [#allocation8], 1
    %22 = vsyncpa %s21, 0
    %23 = vsyncpa [#allocation11], 0
    %s24 = scalar_lea.sflag [#allocation11], 1
    %25 = vsyncpa %s24, 0
    %26 = vsyncpa [#allocation14], 0
    %s27 = scalar_lea.sflag [#allocation14], 1
    %28 = vsyncpa %s27, 0
    loop: start=0, step=1, limit=4
    $region2: #{hete_graph_encoder_forward.2} parent=1 // loop_pre_header
      _
    $region3: #{hete_graph_encoder_forward.2} parent=1 // loop_header
      %s30 = sphi 0, %s34
      %p31 = scmp.ge.s32.totalorder %s30, 4
      %s40 = sphi 0, %s42
      %s43 = sphi 0, %s40
      %s44 = sphi 0, %s43
      %s60 = sphi 0, %s44
      %s66 = sphi 0, %s68
      %s69 = sphi 0, %s66
      %s70 = sphi 0, %s69
      %s86 = sphi 0, %s70
      %s90 = sphi 0, %s90
      %s92 = sphi 0, %s90
      %s93 = sphi 0, %s92
      %s107 = sphi 0, %s93
      %s113 = sphi 0, %s115
      %s116 = sphi 0, %s113
      %s117 = sphi 0, %s116
      %s133 = sphi 0, %s117
      %s139 = sphi 0, %s141
      %s142 = sphi 0, %s139
      %s143 = sphi 0, %s142
      %s159 = sphi 0, %s143
      %s165 = sphi 0, %s167
      %s168 = sphi 0, %s165
      %s169 = sphi 0, %s168
      %s185 = sphi 0, %s169
      %s191 = sphi 0, %s193
      %s194 = sphi 0, %s191
      %s195 = sphi 0, %s194
      %s211 = sphi 0, %s195
      %s217 = sphi 0, %s219
      %s220 = sphi 0, %s217
      %s221 = sphi 0, %s220
      %s237 = sphi 0, %s221
      %s243 = sphi 0, %s245
      %s246 = sphi 0, %s243
      %s247 = sphi 0, %s246
      %s263 = sphi 0, %s247
      %s269 = sphi 0, %s271
      %s272 = sphi 0, %s269
      %s273 = sphi 0, %s272
      %s289 = sphi 0, %s273
    $region4: #{hete_graph_encoder_forward.2} parent=1 // loop_header_branch
      %33 = sbr.rel (%p31) target = $region8
    $region5: #{hete_graph_encoder_forward.2} parent=1 // loop_body
      %s35 = ssub.s32 %s30, 1
      %s36 = ssub.s32 %s30, 2
      %s37 = sadd.s32 %s30, 1
      %s38 = ssub.s32 %s30, %s37
      %p39 = scmp.eq.s32.totalorder %s38, 0
      %s41 = sadd.s32 %s40, 1
      %s42 = scalar_select %p39, %s40, %s41
      %p45 = pneg %p39
      %p46 = scmp.eq.s32.totalorder %s30, 1
      %p47 = por %p45, %p46
      %p48 = scmp.ne.s32.totalorder %s40, %s43
      %p49 = scmp.eq.s32.totalorder %s30, 0
      %p50 = por %p48, %p49
      %p51 = scmp.ne.s32.totalorder %s40, %s43
      %p52 = scmp.eq.s32.totalorder %s35, 1
      %p53 = por %p51, %p52
      %p54 = scmp.ne.s32.totalorder %s43, %s44
      %p55 = scmp.eq.s32.totalorder %s35, 0
      %p56 = por %p54, %p55
      %p57 = scmp.ne.s32.totalorder %s43, %s44
      %p58 = scmp.eq.s32.totalorder %s36, 1
      %p59 = por %p57, %p58
      %p61 = scmp.ne.s32.totalorder %s44, %s60
      %p62 = scmp.eq.s32.totalorder %s36, 0
      %p63 = por %p61, %p62
      %s64 = ssub.s32 %s30, %s37
      %p65 = scmp.eq.s32.totalorder %s64, 0
      %s67 = sadd.s32 %s66, 1
      %s68 = scalar_select %p65, %s66, %s67
      %p71 = pneg %p65
      %p72 = scmp.eq.s32.totalorder %s30, 1
      %p73 = por %p71, %p72
      %p74 = scmp.ne.s32.totalorder %s66, %s69
      %p75 = scmp.eq.s32.totalorder %s30, 0
      %p76 = por %p74, %p75
      %p77 = scmp.ne.s32.totalorder %s66, %s69
      %p78 = scmp.eq.s32.totalorder %s35, 1
      %p79 = por %p77, %p78
      %p80 = scmp.ne.s32.totalorder %s69, %s70
      %p81 = scmp.eq.s32.totalorder %s35, 0
      %p82 = por %p80, %p81
      %p83 = scmp.ne.s32.totalorder %s69, %s70
      %p84 = scmp.eq.s32.totalorder %s36, 1
      %p85 = por %p83, %p84
      %p87 = scmp.ne.s32.totalorder %s70, %s86
      %p88 = scmp.eq.s32.totalorder %s36, 0
      %p89 = por %p87, %p88
      %s91 = sadd.s32 %s90, 1
      %p94 = scmp.eq.s32.totalorder %s30, 1
      %p95 = scmp.ne.s32.totalorder %s90, %s92
      %p96 = scmp.eq.s32.totalorder %s30, 0
      %p97 = por %p95, %p96
      %p98 = scmp.ne.s32.totalorder %s90, %s92
      %p99 = scmp.eq.s32.totalorder %s35, 1
      %p100 = por %p98, %p99
      %p101 = scmp.ne.s32.totalorder %s92, %s93
      %p102 = scmp.eq.s32.totalorder %s35, 0
      %p103 = por %p101, %p102
      %p104 = scmp.ne.s32.totalorder %s92, %s93
      %p105 = scmp.eq.s32.totalorder %s36, 1
      %p106 = por %p104, %p105
      %p108 = scmp.ne.s32.totalorder %s93, %s107
      %p109 = scmp.eq.s32.totalorder %s36, 0
      %p110 = por %p108, %p109
      %s111 = ssub.s32 %s30, %s37
      %p112 = scmp.eq.s32.totalorder %s111, 0
      %s114 = sadd.s32 %s113, 1
      %s115 = scalar_select %p112, %s113, %s114
      %p118 = pneg %p112
      %p119 = scmp.eq.s32.totalorder %s30, 1
      %p120 = por %p118, %p119
      %p121 = scmp.ne.s32.totalorder %s113, %s116
      %p122 = scmp.eq.s32.totalorder %s30, 0
      %p123 = por %p121, %p122
      %p124 = scmp.ne.s32.totalorder %s113, %s116
      %p125 = scmp.eq.s32.totalorder %s35, 1
      %p126 = por %p124, %p125
      %p127 = scmp.ne.s32.totalorder %s116, %s117
      %p128 = scmp.eq.s32.totalorder %s35, 0
      %p129 = por %p127, %p128
      %p130 = scmp.ne.s32.totalorder %s116, %s117
      %p131 = scmp.eq.s32.totalorder %s36, 1
      %p132 = por %p130, %p131
      %p134 = scmp.ne.s32.totalorder %s117, %s133
      %p135 = scmp.eq.s32.totalorder %s36, 0
      %p136 = por %p134, %p135
      %s137 = ssub.s32 %s30, %s37
      %p138 = scmp.eq.s32.totalorder %s137, 0
      %s140 = sadd.s32 %s139, 1
      %s141 = scalar_select %p138, %s139, %s140
      %p144 = pneg %p138
      %p145 = scmp.eq.s32.totalorder %s30, 1
      %p146 = por %p144, %p145
      %p147 = scmp.ne.s32.totalorder %s139, %s142
      %p148 = scmp.eq.s32.totalorder %s30, 0
      %p149 = por %p147, %p148
      %p150 = scmp.ne.s32.totalorder %s139, %s142
      %p151 = scmp.eq.s32.totalorder %s35, 1
      %p152 = por %p150, %p151
      %p153 = scmp.ne.s32.totalorder %s142, %s143
      %p154 = scmp.eq.s32.totalorder %s35, 0
      %p155 = por %p153, %p154
      %p156 = scmp.ne.s32.totalorder %s142, %s143
      %p157 = scmp.eq.s32.totalorder %s36, 1
      %p158 = por %p156, %p157
      %p160 = scmp.ne.s32.totalorder %s143, %s159
      %p161 = scmp.eq.s32.totalorder %s36, 0
      %p162 = por %p160, %p161
      %s163 = ssub.s32 %s30, %s37
      %p164 = scmp.eq.s32.totalorder %s163, 0
      %s166 = sadd.s32 %s165, 1
      %s167 = scalar_select %p164, %s165, %s166
      %p170 = pneg %p164
      %p171 = scmp.eq.s32.totalorder %s30, 1
      %p172 = por %p170, %p171
      %p173 = scmp.ne.s32.totalorder %s165, %s168
      %p174 = scmp.eq.s32.totalorder %s30, 0
      %p175 = por %p173, %p174
      %p176 = scmp.ne.s32.totalorder %s165, %s168
      %p177 = scmp.eq.s32.totalorder %s35, 1
      %p178 = por %p176, %p177
      %p179 = scmp.ne.s32.totalorder %s168, %s169
      %p180 = scmp.eq.s32.totalorder %s35, 0
      %p181 = por %p179, %p180
      %p182 = scmp.ne.s32.totalorder %s168, %s169
      %p183 = scmp.eq.s32.totalorder %s36, 1
      %p184 = por %p182, %p183
      %p186 = scmp.ne.s32.totalorder %s169, %s185
      %p187 = scmp.eq.s32.totalorder %s36, 0
      %p188 = por %p186, %p187
      %s189 = ssub.s32 %s30, %s37
      %p190 = scmp.eq.s32.totalorder %s189, 0
      %s192 = sadd.s32 %s191, 1
      %s193 = scalar_select %p190, %s191, %s192
      %p196 = pneg %p190
      %p197 = scmp.eq.s32.totalorder %s30, 1
      %p198 = por %p196, %p197
      %p199 = scmp.ne.s32.totalorder %s191, %s194
      %p200 = scmp.eq.s32.totalorder %s30, 0
      %p201 = por %p199, %p200
      %p202 = scmp.ne.s32.totalorder %s191, %s194
      %p203 = scmp.eq.s32.totalorder %s35, 1
      %p204 = por %p202, %p203
      %p205 = scmp.ne.s32.totalorder %s194, %s195
      %p206 = scmp.eq.s32.totalorder %s35, 0
      %p207 = por %p205, %p206
      %p208 = scmp.ne.s32.totalorder %s194, %s195
      %p209 = scmp.eq.s32.totalorder %s36, 1
      %p210 = por %p208, %p209
      %p212 = scmp.ne.s32.totalorder %s195, %s211
      %p213 = scmp.eq.s32.totalorder %s36, 0
      %p214 = por %p212, %p213
      %s215 = ssub.s32 %s30, %s37
      %p216 = scmp.eq.s32.totalorder %s215, 0
      %s218 = sadd.s32 %s217, 1
      %s219 = scalar_select %p216, %s217, %s218
      %p222 = pneg %p216
      %p223 = scmp.eq.s32.totalorder %s30, 1
      %p224 = por %p222, %p223
      %p225 = scmp.ne.s32.totalorder %s217, %s220
      %p226 = scmp.eq.s32.totalorder %s30, 0
      %p227 = por %p225, %p226
      %p228 = scmp.ne.s32.totalorder %s217, %s220
      %p229 = scmp.eq.s32.totalorder %s35, 1
      %p230 = por %p228, %p229
      %p231 = scmp.ne.s32.totalorder %s220, %s221
      %p232 = scmp.eq.s32.totalorder %s35, 0
      %p233 = por %p231, %p232
      %p234 = scmp.ne.s32.totalorder %s220, %s221
      %p235 = scmp.eq.s32.totalorder %s36, 1
      %p236 = por %p234, %p235
      %p238 = scmp.ne.s32.totalorder %s221, %s237
      %p239 = scmp.eq.s32.totalorder %s36, 0
      %p240 = por %p238, %p239
      %s241 = ssub.s32 %s30, %s37
      %p242 = scmp.eq.s32.totalorder %s241, 0
      %s244 = sadd.s32 %s243, 1
      %s245 = scalar_select %p242, %s243, %s244
      %p248 = pneg %p242
      %p249 = scmp.eq.s32.totalorder %s30, 1
      %p250 = por %p248, %p249
      %p251 = scmp.ne.s32.totalorder %s243, %s246
      %p252 = scmp.eq.s32.totalorder %s30, 0
      %p253 = por %p251, %p252
      %p254 = scmp.ne.s32.totalorder %s243, %s246
      %p255 = scmp.eq.s32.totalorder %s35, 1
      %p256 = por %p254, %p255
      %p257 = scmp.ne.s32.totalorder %s246, %s247
      %p258 = scmp.eq.s32.totalorder %s35, 0
      %p259 = por %p257, %p258
      %p260 = scmp.ne.s32.totalorder %s246, %s247
      %p261 = scmp.eq.s32.totalorder %s36, 1
      %p262 = por %p260, %p261
      %p264 = scmp.ne.s32.totalorder %s247, %s263
      %p265 = scmp.eq.s32.totalorder %s36, 0
      %p266 = por %p264, %p265
      %s267 = ssub.s32 %s30, %s37
      %p268 = scmp.eq.s32.totalorder %s267, 0
      %s270 = sadd.s32 %s269, 1
      %s271 = scalar_select %p268, %s269, %s270
      %p274 = pneg %p268
      %p275 = scmp.eq.s32.totalorder %s30, 1
      %p276 = por %p274, %p275
      %p277 = scmp.ne.s32.totalorder %s269, %s272
      %p278 = scmp.eq.s32.totalorder %s30, 0
      %p279 = por %p277, %p278
      %p280 = scmp.ne.s32.totalorder %s269, %s272
      %p281 = scmp.eq.s32.totalorder %s35, 1
      %p282 = por %p280, %p281
      %p283 = scmp.ne.s32.totalorder %s272, %s273
      %p284 = scmp.eq.s32.totalorder %s35, 0
      %p285 = por %p283, %p284
      %p286 = scmp.ne.s32.totalorder %s272, %s273
      %p287 = scmp.eq.s32.totalorder %s36, 1
      %p288 = por %p286, %p287
      %p290 = scmp.ne.s32.totalorder %s273, %s289
      %p291 = scmp.eq.s32.totalorder %s36, 0
      %p292 = por %p290, %p291
      %p293 = scmp.le.s32.totalorder 1, %s30
      %p294 = scmp.lt.s32.totalorder %s30, 3
      %p295 = pnand %p293, %p294
      %p296 = pneg %p295
      // Predicated region
      $region9: #{hete_graph_encoder_forward.2} parent=5 // pred_check
        _
      $region10: #{hete_graph_encoder_forward.2} parent=5 // pred_check_branch
        %298 = sbr.rel (%p295) target = $region12
      $region11: #{hete_graph_encoder_forward.2} parent=5 // pred_region
        %s299 = ssub.s32 %s30, 1
        // Predicated region
        $region13: #{hete_graph_encoder_forward.2} parent=11 // pred_check
          %p300 = pneg %p103
        $region14: #{hete_graph_encoder_forward.2} parent=11 // pred_check_branch
          %302 = sbr.rel (%p300) target = $region16
        $region15: #{hete_graph_encoder_forward.2} parent=11 // pred_region
          _
        $region16: #{hete_graph_encoder_forward.2} parent=11 // pred_fallthru
          _
      $region12: #{hete_graph_encoder_forward.2} parent=5 // pred_fallthru
        _
      %p303 = scmp.lt.s32.totalorder %s30, 2
      // Predicated region
      $region17: #{hete_graph_encoder_forward.2} parent=5 // pred_check
        %p304 = pneg %p303
      $region18: #{hete_graph_encoder_forward.2} parent=5 // pred_check_branch
        %306 = sbr.rel (%p304) target = $region20
      $region19: #{hete_graph_encoder_forward.2} parent=5 // pred_region
        // Predicated region
        $region21: #{hete_graph_encoder_forward.2} parent=19 // pred_check
          %p307 = pneg %p50
        $region22: #{hete_graph_encoder_forward.2} parent=19 // pred_check_branch
          %309 = sbr.rel (%p307) target = $region24
        $region23: #{hete_graph_encoder_forward.2} parent=19 // pred_region
          %s310 = sand.u32 %s40, 1
          %s311 = scalar_lea.sflag [#allocation3], %s310
          %s312 = sand.u32 %s40, 1
          %s313 = smul.addr %s312, 32
          %s314 = scalar_lea.vmem [#allocation2], %s313
          %s316 = ssub.s32 512, 512
          %317 = vsyncadd %s311, %s316
          %s318 = smul.addr %s30, 4
          %s319 = smul.addr %s318, 128
          %s320 = scalar_lea.hbm %s0, %s319
          %s321 = sshll.u32 %s314, 4
          %s322 = int_to_ptr.vmem [resolvable:$true] %s321
          %327 = dma.hbm_to_vmem [thread:$0]  %s320, 512, %s322, %s311, 128, 128, 8
        $region24: #{hete_graph_encoder_forward.2} parent=19 // pred_fallthru
          _
        // Predicated region
        $region25: #{hete_graph_encoder_forward.2} parent=19 // pred_check
          %p328 = pneg %p76
        $region26: #{hete_graph_encoder_forward.2} parent=19 // pred_check_branch
          %330 = sbr.rel (%p328) target = $region28
        $region27: #{hete_graph_encoder_forward.2} parent=19 // pred_region
          %s331 = sand.u32 %s30, 1
          %s332 = scalar_lea.sflag [#allocation5], %s331
          %s333 = sand.u32 %s66, 1
          %s334 = smul.addr %s333, 32
          %s335 = scalar_lea.vmem [#allocation4], %s334
          %s337 = ssub.s32 512, 512
          %338 = vsyncadd %s332, %s337
          %s339 = smul.addr %s30, 4
          %s340 = smul.addr %s339, 128
          %s341 = scalar_lea.hbm %s1, %s340
          %s342 = sshll.u32 %s335, 4
          %s343 = int_to_ptr.vmem [resolvable:$true] %s342
          %348 = dma.hbm_to_vmem [thread:$0]  %s341, 512, %s343, %s332, 128, 128, 8
        $region28: #{hete_graph_encoder_forward.2} parent=19 // pred_fallthru
          _
        // Predicated region
        $region29: #{hete_graph_encoder_forward.2} parent=19 // pred_check
          %p349 = pneg %p123
        $region30: #{hete_graph_encoder_forward.2} parent=19 // pred_check_branch
          %351 = sbr.rel (%p349) target = $region32
        $region31: #{hete_graph_encoder_forward.2} parent=19 // pred_region
          %s352 = sand.u32 %s30, 1
          %s353 = scalar_lea.sflag [#allocation5], %s352
          %s354 = sand.u32 %s113, 1
          %s355 = smul.addr %s354, 256
          %s356 = scalar_lea.vmem [#allocation6], %s355
          %s358 = ssub.s32 4096, 4096
          %359 = vsyncadd %s353, %s358
          %s360 = smul.addr %s30, 32
          %s361 = smul.addr %s360, 128
          %s362 = scalar_lea.hbm %s3, %s361
          %s363 = sshll.u32 %s356, 4
          %s364 = int_to_ptr.vmem [resolvable:$true] %s363
          %369 = dma.hbm_to_vmem [thread:$0]  %s362, 4096, %s364, %s353, 128, 128, 8
        $region32: #{hete_graph_encoder_forward.2} parent=19 // pred_fallthru
          _
        // Predicated region
        $region33: #{hete_graph_encoder_forward.2} parent=19 // pred_check
          %p370 = pneg %p149
        $region34: #{hete_graph_encoder_forward.2} parent=19 // pred_check_branch
          %372 = sbr.rel (%p370) target = $region36
        $region35: #{hete_graph_encoder_forward.2} parent=19 // pred_region
          %s373 = sand.u32 %s30, 1
          %s374 = scalar_lea.sflag [#allocation8], %s373
          %s375 = sand.u32 %s139, 1
          %s376 = smul.addr %s375, 2
          %s377 = scalar_lea.vmem [#allocation7], %s376
          %s379 = ssub.s32 32, 32
          %380 = vsyncadd %s374, %s379
          %s381 = smul.addr %s30, 2
          %s382 = smul.addr %s381, 16
          %s383 = scalar_lea.hbm %s4, %s382
          %s384 = sshll.u32 %s377, 4
          %s385 = int_to_ptr.vmem [resolvable:$true] %s384
          %390 = dma.hbm_to_vmem [thread:$0]  %s383, 32, %s385, %s374, 16, 16, 1
        $region36: #{hete_graph_encoder_forward.2} parent=19 // pred_fallthru
          _
        // Predicated region
        $region37: #{hete_graph_encoder_forward.2} parent=19 // pred_check
          %p391 = pneg %p175
        $region38: #{hete_graph_encoder_forward.2} parent=19 // pred_check_branch
          %393 = sbr.rel (%p391) target = $region40
        $region39: #{hete_graph_encoder_forward.2} parent=19 // pred_region
          %s394 = sand.u32 %s30, 1
          %s395 = scalar_lea.sflag [#allocation8], %s394
          %s396 = sand.u32 %s165, 1
          %s397 = smul.addr %s396, 256
          %s398 = scalar_lea.vmem [#allocation9], %s397
          %s400 = ssub.s32 4096, 4096
          %401 = vsyncadd %s395, %s400
          %s402 = smul.addr %s30, 32
          %s403 = smul.addr %s402, 128
          %s404 = scalar_lea.hbm %s5, %s403
          %s405 = sshll.u32 %s398, 4
          %s406 = int_to_ptr.vmem [resolvable:$true] %s405
          %411 = dma.hbm_to_vmem [thread:$0]  %s404, 4096, %s406, %s395, 128, 128, 8
        $region40: #{hete_graph_encoder_forward.2} parent=19 // pred_fallthru
          _
        // Predicated region
        $region41: #{hete_graph_encoder_forward.2} parent=19 // pred_check
          %p412 = pneg %p201
        $region42: #{hete_graph_encoder_forward.2} parent=19 // pred_check_branch
          %414 = sbr.rel (%p412) target = $region44
        $region43: #{hete_graph_encoder_forward.2} parent=19 // pred_region
          %s415 = sand.u32 %s30, 1
          %s416 = scalar_lea.sflag [#allocation11], %s415
          %s417 = sand.u32 %s191, 1
          %s418 = smul.addr %s417, 2
          %s419 = scalar_lea.vmem [#allocation10], %s418
          %s421 = ssub.s32 32, 32
          %422 = vsyncadd %s416, %s421
          %s423 = smul.addr %s30, 2
          %s424 = smul.addr %s423, 16
          %s425 = scalar_lea.hbm %s6, %s424
          %s426 = sshll.u32 %s419, 4
          %s427 = int_to_ptr.vmem [resolvable:$true] %s426
          %432 = dma.hbm_to_vmem [thread:$0]  %s425, 32, %s427, %s416, 16, 16, 1
        $region44: #{hete_graph_encoder_forward.2} parent=19 // pred_fallthru
          _
        // Predicated region
        $region45: #{hete_graph_encoder_forward.2} parent=19 // pred_check
          %p433 = pneg %p227
        $region46: #{hete_graph_encoder_forward.2} parent=19 // pred_check_branch
          %435 = sbr.rel (%p433) target = $region48
        $region47: #{hete_graph_encoder_forward.2} parent=19 // pred_region
          %s436 = sand.u32 %s30, 1
          %s437 = scalar_lea.sflag [#allocation11], %s436
          %s438 = sand.u32 %s217, 1
          %s439 = smul.addr %s438, 384
          %s440 = scalar_lea.vmem [#allocation12], %s439
          %s442 = ssub.s32 6144, 6144
          %443 = vsyncadd %s437, %s442
          %s444 = smul.addr %s30, 48
          %s445 = smul.addr %s444, 128
          %s446 = scalar_lea.hbm %s7, %s445
          %s447 = sshll.u32 %s440, 4
          %s448 = int_to_ptr.vmem [resolvable:$true] %s447
          %453 = dma.hbm_to_vmem [thread:$0]  %s446, 6144, %s448, %s437, 128, 128, 8
        $region48: #{hete_graph_encoder_forward.2} parent=19 // pred_fallthru
          _
        // Predicated region
        $region49: #{hete_graph_encoder_forward.2} parent=19 // pred_check
          %p454 = pneg %p253
        $region50: #{hete_graph_encoder_forward.2} parent=19 // pred_check_branch
          %456 = sbr.rel (%p454) target = $region52
        $region51: #{hete_graph_encoder_forward.2} parent=19 // pred_region
          %s457 = sand.u32 %s243, 1
          %s458 = scalar_lea.sflag [#allocation14], %s457
          %s459 = sand.u32 %s243, 1
          %s460 = smul.addr %s459, 3
          %s461 = scalar_lea.vmem [#allocation13], %s460
          %s463 = ssub.s32 48, 48
          %464 = vsyncadd %s458, %s463
          %s465 = smul.addr %s30, 3
          %s466 = smul.addr %s465, 16
          %s467 = scalar_lea.hbm %s8, %s466
          %s468 = sshll.u32 %s461, 4
          %s469 = int_to_ptr.vmem [resolvable:$true] %s468
          %474 = dma.hbm_to_vmem [thread:$0]  %s467, 48, %s469, %s458, 16, 16, 1
        $region52: #{hete_graph_encoder_forward.2} parent=19 // pred_fallthru
          _
      $region20: #{hete_graph_encoder_forward.2} parent=5 // pred_fallthru
        _
      %p475 = scmp.le.s32.totalorder 1, %s30
      %p476 = scmp.lt.s32.totalorder %s30, 3
      %p477 = pnand %p475, %p476
      %p478 = pneg %p477
      // Predicated region
      $region53: #{hete_graph_encoder_forward.2} parent=5 // pred_check
        _
      $region54: #{hete_graph_encoder_forward.2} parent=5 // pred_check_branch
        %480 = sbr.rel (%p477) target = $region56
      $region55: #{hete_graph_encoder_forward.2} parent=5 // pred_region
        %s481 = ssub.s32 %s30, 1
        %s482 = sand.u32 %s43, 1
        %s483 = scalar_lea.sflag [#allocation3], %s482
        %s484 = sand.u32 %s43, 1
        %s485 = smul.addr %s484, 32
        %s486 = scalar_lea.vmem [#allocation2], %s485
        // Predicated region
        $region57: #{hete_graph_encoder_forward.2} parent=55 // pred_check
          %p487 = pneg %p56
        $region58: #{hete_graph_encoder_forward.2} parent=55 // pred_check_branch
          %489 = sbr.rel (%p487) target = $region60
        $region59: #{hete_graph_encoder_forward.2} parent=55 // pred_region
          %490 = dma.done %s483, 512
        $region60: #{hete_graph_encoder_forward.2} parent=55 // pred_fallthru
          _
        %s491 = sand.u32 %s35, 1
        %s492 = scalar_lea.sflag [#allocation5], %s491
        %s493 = sand.u32 %s69, 1
        %s494 = smul.addr %s493, 32
        %s495 = scalar_lea.vmem [#allocation4], %s494
        // Predicated region
        $region61: #{hete_graph_encoder_forward.2} parent=55 // pred_check
          %p496 = pneg %p82
        $region62: #{hete_graph_encoder_forward.2} parent=55 // pred_check_branch
          %498 = sbr.rel (%p496) target = $region64
        $region63: #{hete_graph_encoder_forward.2} parent=55 // pred_region
          %499 = dma.done %s492, 512
        $region64: #{hete_graph_encoder_forward.2} parent=55 // pred_fallthru
          _
        %s500 = sand.u32 %s35, 1
        %s501 = scalar_lea.sflag [#allocation5], %s500
        %s502 = sand.u32 %s116, 1
        %s503 = smul.addr %s502, 256
        %s504 = scalar_lea.vmem [#allocation6], %s503
        // Predicated region
        $region65: #{hete_graph_encoder_forward.2} parent=55 // pred_check
          %p505 = pneg %p129
        $region66: #{hete_graph_encoder_forward.2} parent=55 // pred_check_branch
          %507 = sbr.rel (%p505) target = $region68
        $region67: #{hete_graph_encoder_forward.2} parent=55 // pred_region
          %508 = dma.done %s501, 4096
        $region68: #{hete_graph_encoder_forward.2} parent=55 // pred_fallthru
          _
        %s509 = sand.u32 %s35, 1
        %s510 = scalar_lea.sflag [#allocation8], %s509
        %s511 = sand.u32 %s142, 1
        %s512 = smul.addr %s511, 2
        %s513 = scalar_lea.vmem [#allocation7], %s512
        // Predicated region
        $region69: #{hete_graph_encoder_forward.2} parent=55 // pred_check
          %p514 = pneg %p155
        $region70: #{hete_graph_encoder_forward.2} parent=55 // pred_check_branch
          %516 = sbr.rel (%p514) target = $region72
        $region71: #{hete_graph_encoder_forward.2} parent=55 // pred_region
          %517 = dma.done %s510, 32
        $region72: #{hete_graph_encoder_forward.2} parent=55 // pred_fallthru
          _
        %s518 = sand.u32 %s35, 1
        %s519 = scalar_lea.sflag [#allocation8], %s518
        %s520 = sand.u32 %s168, 1
        %s521 = smul.addr %s520, 256
        %s522 = scalar_lea.vmem [#allocation9], %s521
        // Predicated region
        $region73: #{hete_graph_encoder_forward.2} parent=55 // pred_check
          %p523 = pneg %p181
        $region74: #{hete_graph_encoder_forward.2} parent=55 // pred_check_branch
          %525 = sbr.rel (%p523) target = $region76
        $region75: #{hete_graph_encoder_forward.2} parent=55 // pred_region
          %526 = dma.done %s519, 4096
        $region76: #{hete_graph_encoder_forward.2} parent=55 // pred_fallthru
          _
        %s527 = sand.u32 %s35, 1
        %s528 = scalar_lea.sflag [#allocation11], %s527
        %s529 = sand.u32 %s194, 1
        %s530 = smul.addr %s529, 2
        %s531 = scalar_lea.vmem [#allocation10], %s530
        // Predicated region
        $region77: #{hete_graph_encoder_forward.2} parent=55 // pred_check
          %p532 = pneg %p207
        $region78: #{hete_graph_encoder_forward.2} parent=55 // pred_check_branch
          %534 = sbr.rel (%p532) target = $region80
        $region79: #{hete_graph_encoder_forward.2} parent=55 // pred_region
          %535 = dma.done %s528, 32
        $region80: #{hete_graph_encoder_forward.2} parent=55 // pred_fallthru
          _
        %s536 = sand.u32 %s35, 1
        %s537 = scalar_lea.sflag [#allocation11], %s536
        %s538 = sand.u32 %s220, 1
        %s539 = smul.addr %s538, 384
        %s540 = scalar_lea.vmem [#allocation12], %s539
        // Predicated region
        $region81: #{hete_graph_encoder_forward.2} parent=55 // pred_check
          %p541 = pneg %p233
        $region82: #{hete_graph_encoder_forward.2} parent=55 // pred_check_branch
          %543 = sbr.rel (%p541) target = $region84
        $region83: #{hete_graph_encoder_forward.2} parent=55 // pred_region
          %544 = dma.done %s537, 6144
        $region84: #{hete_graph_encoder_forward.2} parent=55 // pred_fallthru
          _
        %s545 = sand.u32 %s246, 1
        %s546 = scalar_lea.sflag [#allocation14], %s545
        %s547 = sand.u32 %s246, 1
        %s548 = smul.addr %s547, 3
        %s549 = scalar_lea.vmem [#allocation13], %s548
        // Predicated region
        $region85: #{hete_graph_encoder_forward.2} parent=55 // pred_check
          %p550 = pneg %p259
        $region86: #{hete_graph_encoder_forward.2} parent=55 // pred_check_branch
          %552 = sbr.rel (%p550) target = $region88
        $region87: #{hete_graph_encoder_forward.2} parent=55 // pred_region
          %553 = dma.done %s546, 48
        $region88: #{hete_graph_encoder_forward.2} parent=55 // pred_fallthru
          _
        %s554 = sand.u32 %s43, 1
        %s555 = scalar_lea.sflag [#allocation3], %s554
        %s556 = sand.u32 %s43, 1
        %s557 = smul.addr %s556, 32
        %s558 = scalar_lea.vmem [#allocation2], %s557
        %p559 = pneg %p56
        %p560 = pneg %p53
        %s561 = sand.u32 %s35, 1
        %s562 = scalar_lea.sflag [#allocation5], %s561
        %s563 = sand.u32 %s69, 1
        %s564 = smul.addr %s563, 32
        %s565 = scalar_lea.vmem [#allocation4], %s564
        %p566 = pneg %p82
        %p567 = pneg %p79
        %p568 = pneg %p103
        %p569 = pneg %p100
        %s570 = sand.u32 %s35, 1
        %s571 = scalar_lea.sflag [#allocation5], %s570
        %s572 = sand.u32 %s116, 1
        %s573 = smul.addr %s572, 256
        %s574 = scalar_lea.vmem [#allocation6], %s573
        %p575 = pneg %p129
        %p576 = pneg %p126
        %s577 = sand.u32 %s35, 1
        %s578 = scalar_lea.sflag [#allocation8], %s577
        %s579 = sand.u32 %s142, 1
        %s580 = smul.addr %s579, 2
        %s581 = scalar_lea.vmem [#allocation7], %s580
        %p582 = pneg %p155
        %p583 = pneg %p152
        %s584 = sand.u32 %s35, 1
        %s585 = scalar_lea.sflag [#allocation8], %s584
        %s586 = sand.u32 %s168, 1
        %s587 = smul.addr %s586, 256
        %s588 = scalar_lea.vmem [#allocation9], %s587
        %p589 = pneg %p181
        %p590 = pneg %p178
        %s591 = sand.u32 %s35, 1
        %s592 = scalar_lea.sflag [#allocation11], %s591
        %s593 = sand.u32 %s194, 1
        %s594 = smul.addr %s593, 2
        %s595 = scalar_lea.vmem [#allocation10], %s594
        %p596 = pneg %p207
        %p597 = pneg %p204
        %s598 = sand.u32 %s35, 1
        %s599 = scalar_lea.sflag [#allocation11], %s598
        %s600 = sand.u32 %s220, 1
        %s601 = smul.addr %s600, 384
        %s602 = scalar_lea.vmem [#allocation12], %s601
        %p603 = pneg %p233
        %p604 = pneg %p230
        %s605 = sand.u32 %s246, 1
        %s606 = scalar_lea.sflag [#allocation14], %s605
        %s607 = sand.u32 %s246, 1
        %s608 = smul.addr %s607, 3
        %s609 = scalar_lea.vmem [#allocation13], %s608
        %p610 = pneg %p259
        %p611 = pneg %p256
        %p612 = pneg %p285
        %p613 = pneg %p282
        %p614 = scmp.lt.s32.totalorder %s35, 1
        %s615 = scalar_select %p614, %s35, 1
        %s616 = smul.addr %s615, 2
        %s617 = scalar_lea.vmem %s9, %s616
        %p618 = scmp.lt.s32.totalorder %s35, 1
        %s619 = scalar_select %p618, %s35, 1
        %s620 = smul.addr %s619, 2
        %s621 = scalar_lea.vmem %s9, %s620
        %v622 = vld [vmem:[%s486] sm:$0xff]
        %v623 = vld [vmem:[%s486 + $0x8] sm:$0xff]
        %v624 = vld [vmem:[%s486 + $0x10] sm:$0xff]
        %v625 = vld [vmem:[%s486 + $0x18] sm:$0xff]
        %v626 = vld [vmem:[%s2] sm:$0x3]
        %v627 = vld [vmem:[%s495] sm:$0xff]
        %v628 = vld [vmem:[%s495 + $0x8] sm:$0xff]
        %v629 = vld [vmem:[%s495 + $0x10] sm:$0xff]
        %v630 = vld [vmem:[%s495 + $0x18] sm:$0xff]
        %vm631 = vcmask 261120
        %v633 = vsel %vm631, %v626, 0
        %635 = vmatprep.subr.mxu0 0.0
        %636 = vmatpush1.msra.mxu0 0.0
        %637 = vmatprep.subr.mxu0 0.0
        %638 = vmatpush1.msra.mxu0 0.0
        %639 = vmatprep.subr.mxu0 0.0
        %640 = vmatpush1.msra.mxu0 0.0
        %641 = vmatprep.subr.mxu0 0.0
        %642 = vmatpush1.msra.mxu0 0.0
        %643 = vmatprep.subr.mxu0 0.0
        %644 = vmatpush1.msra.mxu0 0.0
        %645 = vmatprep.subr.mxu0 0.0
        %646 = vmatpush1.msra.mxu0 0.0
        %647 = vmatprep.subr.mxu0 0.0
        %648 = vmatpush1.msra.mxu0 0.0
        %649 = vmatprep.subr.mxu0 0.0
        %650 = vmatpush1.msra.mxu0 0.0
        %651 = vmatprep.subr.mxu0 0.0
        %652 = vmatpush1.msra.mxu0 0.0
        %653 = vmatprep.subr.mxu0 0.0
        %654 = vmatpush1.msra.mxu0 0.0
        %655 = vmatprep.subr.mxu0 0.0
        %656 = vmatpush1.msra.mxu0 0.0
        %657 = vmatprep.subr.mxu0 0.0
        %658 = vmatpush1.msra.mxu0 0.0
        %659 = vmatprep.subr.mxu0 0.0
        %660 = vmatpush1.msra.mxu0 %v630
        %661 = vmatprep.subr.mxu0 0.0
        %662 = vmatpush1.msra.mxu0 %v629
        %663 = vmatprep.subr.mxu0 0.0
        %664 = vmatpush1.msra.mxu0 %v628
        %665 = vmatprep.subr.mxu0 0.0
        %666 = vmatpush1.msra.mxu0 %v627
        %667 = vmatprep.subr.mxu0 0.0
        %668 = vmatpush2.msra.mxu0 0.0
        %669 = vmatprep.subr.mxu0 0.0
        %670 = vmatpush2.msra.mxu0 0.0
        %671 = vmatprep.subr.mxu0 0.0
        %672 = vmatpush2.msra.mxu0 0.0
        %673 = vmatprep.subr.mxu0 0.0
        %674 = vmatpush2.msra.mxu0 0.0
        %675 = vmatprep.subr.mxu0 0.0
        %676 = vmatpush2.msra.mxu0 0.0
        %677 = vmatprep.subr.mxu0 0.0
        %678 = vmatpush2.msra.mxu0 0.0
        %679 = vmatprep.subr.mxu0 0.0
        %680 = vmatpush2.msra.mxu0 0.0
        %681 = vmatprep.subr.mxu0 0.0
        %682 = vmatpush2.msra.mxu0 0.0
        %683 = vmatprep.subr.mxu0 0.0
        %684 = vmatpush2.msra.mxu0 0.0
        %685 = vmatprep.subr.mxu0 0.0
        %686 = vmatpush2.msra.mxu0 0.0
        %687 = vmatprep.subr.mxu0 0.0
        %688 = vmatpush2.msra.mxu0 0.0
        %689 = vmatprep.subr.mxu0 0.0
        %690 = vmatpush2.msra.mxu0 0.0
        %691 = vmatprep.subr.mxu0 0.0
        %692 = vmatpush2.msra.mxu0 0.0
        %693 = vmatprep.subr.mxu0 0.0
        %694 = vmatpush2.msra.mxu0 0.0
        %695 = vmatprep.subr.mxu0 0.0
        %696 = vmatpush2.msra.mxu0 0.0
        %697 = vmatprep.subr.mxu0 0.0
        %698 = vmatpush2.msra.mxu0 0.0
        %699 = vmatprep.mubr.f32.mxu0 0.0
        %700 = vmatmul.mubr.f32.gmra.mxu0 %v633
        %v701 = vpop.f32.mrf.mxu0
        %v702 = vadd.f32 0.0, %v701
        %v703 = vpop.f32.mrf.mxu0
        %704 = vdwg.mxu0
        %v705 = vld [vmem:[%s540] sm:$0xff]
        %v706 = vld [vmem:[%s540 + $0x8] sm:$0xff]
        %v707 = vld [vmem:[%s540 + $0x10] sm:$0xff]
        %v708 = vld [vmem:[%s540 + $0x18] sm:$0xff]
        %v709 = vld [vmem:[%s540 + $0x20] sm:$0xff]
        %v710 = vld [vmem:[%s540 + $0x28] sm:$0xff]
        %v711 = vld [vmem:[%s540 + $0x30] sm:$0xff]
        %v712 = vld [vmem:[%s540 + $0x38] sm:$0xff]
        %v713 = vld [vmem:[%s540 + $0x40] sm:$0xff]
        %v714 = vld [vmem:[%s540 + $0x48] sm:$0xff]
        %v715 = vld [vmem:[%s540 + $0x50] sm:$0xff]
        %v716 = vld [vmem:[%s540 + $0x58] sm:$0xff]
        %v717 = vld [vmem:[%s540 + $0x60] sm:$0xff]
        %v718 = vld [vmem:[%s540 + $0x68] sm:$0xff]
        %v719 = vld [vmem:[%s540 + $0x70] sm:$0xff]
        %v720 = vld [vmem:[%s540 + $0x78] sm:$0xff]
        %v721 = vld [vmem:[%s549] sm:$0x1]
        %v723 = vlaneseq
        %v724 = vshrl.u32 %v723, 7
        %v725 = vsub.s32 0, %v724
        %v726 = vrot.slane %v721, %v725
        %728 = vmatprep.subr.mxu0 0.0
        %729 = vmatpush1.msra.mxu0 %v720
        %730 = vmatprep.subr.mxu0 0.0
        %731 = vmatpush1.msra.mxu0 %v719
        %732 = vmatprep.subr.mxu0 0.0
        %733 = vmatpush1.msra.mxu0 %v718
        %734 = vmatprep.subr.mxu0 0.0
        %735 = vmatpush1.msra.mxu0 %v717
        %736 = vmatprep.subr.mxu0 0.0
        %737 = vmatpush1.msra.mxu0 %v716
        %738 = vmatprep.subr.mxu0 0.0
        %739 = vmatpush1.msra.mxu0 %v715
        %740 = vmatprep.subr.mxu0 0.0
        %741 = vmatpush1.msra.mxu0 %v714
        %742 = vmatprep.subr.mxu0 0.0
        %743 = vmatpush1.msra.mxu0 %v713
        %744 = vmatprep.subr.mxu0 0.0
        %745 = vmatpush1.msra.mxu0 %v712
        %746 = vmatprep.subr.mxu0 0.0
        %747 = vmatpush1.msra.mxu0 %v711
        %748 = vmatprep.subr.mxu0 0.0
        %749 = vmatpush1.msra.mxu0 %v710
        %750 = vmatprep.subr.mxu0 0.0
        %751 = vmatpush1.msra.mxu0 %v709
        %752 = vmatprep.subr.mxu0 0.0
        %753 = vmatpush1.msra.mxu0 %v708
        %754 = vmatprep.subr.mxu0 0.0
        %755 = vmatpush1.msra.mxu0 %v707
        %756 = vmatprep.subr.mxu0 0.0
        %757 = vmatpush1.msra.mxu0 %v706
        %758 = vmatprep.subr.mxu0 0.0
        %759 = vmatpush1.msra.mxu0 %v705
        %760 = vmatprep.subr.mxu0 0.0
        %761 = vmatpush2.msra.mxu0 0.0
        %762 = vmatprep.subr.mxu0 0.0
        %763 = vmatpush2.msra.mxu0 0.0
        %764 = vmatprep.subr.mxu0 0.0
        %765 = vmatpush2.msra.mxu0 0.0
        %766 = vmatprep.subr.mxu0 0.0
        %767 = vmatpush2.msra.mxu0 0.0
        %768 = vmatprep.subr.mxu0 0.0
        %769 = vmatpush2.msra.mxu0 0.0
        %770 = vmatprep.subr.mxu0 0.0
        %771 = vmatpush2.msra.mxu0 0.0
        %772 = vmatprep.subr.mxu0 0.0
        %773 = vmatpush2.msra.mxu0 0.0
        %774 = vmatprep.subr.mxu0 0.0
        %775 = vmatpush2.msra.mxu0 0.0
        %776 = vmatprep.subr.mxu0 0.0
        %777 = vmatpush2.msra.mxu0 0.0
        %778 = vmatprep.subr.mxu0 0.0
        %779 = vmatpush2.msra.mxu0 0.0
        %780 = vmatprep.subr.mxu0 0.0
        %781 = vmatpush2.msra.mxu0 0.0
        %782 = vmatprep.subr.mxu0 0.0
        %783 = vmatpush2.msra.mxu0 0.0
        %784 = vmatprep.subr.mxu0 0.0
        %785 = vmatpush2.msra.mxu0 0.0
        %786 = vmatprep.subr.mxu0 0.0
        %787 = vmatpush2.msra.mxu0 0.0
        %788 = vmatprep.subr.mxu0 0.0
        %789 = vmatpush2.msra.mxu0 0.0
        %790 = vmatprep.subr.mxu0 0.0
        %791 = vmatpush2.msra.mxu0 0.0
        %792 = vmatprep.mubr.f32.mxu0 0.0
        %793 = vmatmul.mubr.f32.gmra.mxu0 %v702
        %v794 = vpop.f32.mrf.mxu0
        %v795 = vadd.f32 %v726, %v794
        %v796 = vpop.f32.mrf.mxu0
        %797 = vdwg.mxu0
        %vm798 = vcmask 130048
        %v800 = vsel %vm798, %v622, 0
        %v803 = vsel %vm798, %v623, 0
        %805 = vmatprep.subr.mxu0 0.0
        %806 = vmatpush1.msra.mxu0 0.0
        %807 = vmatprep.subr.mxu0 0.0
        %808 = vmatpush1.msra.mxu0 0.0
        %809 = vmatprep.subr.mxu0 0.0
        %810 = vmatpush1.msra.mxu0 0.0
        %811 = vmatprep.subr.mxu0 0.0
        %812 = vmatpush1.msra.mxu0 0.0
        %813 = vmatprep.subr.mxu0 0.0
        %814 = vmatpush1.msra.mxu0 0.0
        %815 = vmatprep.subr.mxu0 0.0
        %816 = vmatpush1.msra.mxu0 0.0
        %817 = vmatprep.subr.mxu0 0.0
        %818 = vmatpush1.msra.mxu0 0.0
        %819 = vmatprep.subr.mxu0 0.0
        %820 = vmatpush1.msra.mxu0 0.0
        %821 = vmatprep.subr.mxu0 0.0
        %822 = vmatpush1.msra.mxu0 0.0
        %823 = vmatprep.subr.mxu0 0.0
        %824 = vmatpush1.msra.mxu0 0.0
        %825 = vmatprep.subr.mxu0 0.0
        %826 = vmatpush1.msra.mxu0 0.0
        %827 = vmatprep.subr.mxu0 0.0
        %828 = vmatpush1.msra.mxu0 0.0
        %829 = vmatprep.subr.mxu0 0.0
        %830 = vmatpush1.msra.mxu0 0.0
        %831 = vmatprep.subr.mxu0 0.0
        %832 = vmatpush1.msra.mxu0 0.0
        %833 = vmatprep.subr.mxu0 0.0
        %834 = vmatpush1.msra.mxu0 %v628
        %835 = vmatprep.subr.mxu0 0.0
        %836 = vmatpush1.msra.mxu0 %v627
        %837 = vmatprep.subr.mxu0 0.0
        %838 = vmatpush2.msra.mxu0 0.0
        %839 = vmatprep.subr.mxu0 0.0
        %840 = vmatpush2.msra.mxu0 0.0
        %841 = vmatprep.subr.mxu0 0.0
        %842 = vmatpush2.msra.mxu0 0.0
        %843 = vmatprep.subr.mxu0 0.0
        %844 = vmatpush2.msra.mxu0 0.0
        %845 = vmatprep.subr.mxu0 0.0
        %846 = vmatpush2.msra.mxu0 0.0
        %847 = vmatprep.subr.mxu0 0.0
        %848 = vmatpush2.msra.mxu0 0.0
        %849 = vmatprep.subr.mxu0 0.0
        %850 = vmatpush2.msra.mxu0 0.0
        %851 = vmatprep.subr.mxu0 0.0
        %852 = vmatpush2.msra.mxu0 0.0
        %853 = vmatprep.subr.mxu0 0.0
        %854 = vmatpush2.msra.mxu0 0.0
        %855 = vmatprep.subr.mxu0 0.0
        %856 = vmatpush2.msra.mxu0 0.0
        %857 = vmatprep.subr.mxu0 0.0
        %858 = vmatpush2.msra.mxu0 0.0
        %859 = vmatprep.subr.mxu0 0.0
        %860 = vmatpush2.msra.mxu0 0.0
        %861 = vmatprep.subr.mxu0 0.0
        %862 = vmatpush2.msra.mxu0 0.0
        %863 = vmatprep.subr.mxu0 0.0
        %864 = vmatpush2.msra.mxu0 0.0
        %865 = vmatprep.subr.mxu0 0.0
        %866 = vmatpush2.msra.mxu0 0.0
        %867 = vmatprep.subr.mxu0 0.0
        %868 = vmatpush2.msra.mxu0 0.0
        %869 = vmatprep.mubr.f32.mxu0 0.0
        %870 = vmatmul.mubr.f32.gmra.mxu0 %v800
        %v871 = vpop.f32.mrf.mxu0
        %v872 = vadd.f32 0.0, %v871
        %v873 = vpop.f32.mrf.mxu0
        %874 = vmatprep.mubr.f32.mxu0 0.0
        %875 = vmatmul.mubr.f32.gmra.mxu0 %v803
        %v876 = vpop.f32.mrf.mxu0
        %v877 = vadd.f32 0.0, %v876
        %v878 = vpop.f32.mrf.mxu0
        %879 = vdwg.mxu0
        %v881 = vsel %vm798, %v624, 0
        %v884 = vsel %vm798, %v625, 0
        %886 = vmatprep.subr.mxu0 0.0
        %887 = vmatpush1.msra.mxu0 0.0
        %888 = vmatprep.subr.mxu0 0.0
        %889 = vmatpush1.msra.mxu0 0.0
        %890 = vmatprep.subr.mxu0 0.0
        %891 = vmatpush1.msra.mxu0 0.0
        %892 = vmatprep.subr.mxu0 0.0
        %893 = vmatpush1.msra.mxu0 0.0
        %894 = vmatprep.subr.mxu0 0.0
        %895 = vmatpush1.msra.mxu0 0.0
        %896 = vmatprep.subr.mxu0 0.0
        %897 = vmatpush1.msra.mxu0 0.0
        %898 = vmatprep.subr.mxu0 0.0
        %899 = vmatpush1.msra.mxu0 0.0
        %900 = vmatprep.subr.mxu0 0.0
        %901 = vmatpush1.msra.mxu0 0.0
        %902 = vmatprep.subr.mxu0 0.0
        %903 = vmatpush1.msra.mxu0 0.0
        %904 = vmatprep.subr.mxu0 0.0
        %905 = vmatpush1.msra.mxu0 0.0
        %906 = vmatprep.subr.mxu0 0.0
        %907 = vmatpush1.msra.mxu0 0.0
        %908 = vmatprep.subr.mxu0 0.0
        %909 = vmatpush1.msra.mxu0 0.0
        %910 = vmatprep.subr.mxu0 0.0
        %911 = vmatpush1.msra.mxu0 0.0
        %912 = vmatprep.subr.mxu0 0.0
        %913 = vmatpush1.msra.mxu0 0.0
        %914 = vmatprep.subr.mxu0 0.0
        %915 = vmatpush1.msra.mxu0 %v630
        %916 = vmatprep.subr.mxu0 0.0
        %917 = vmatpush1.msra.mxu0 %v629
        %918 = vmatprep.subr.mxu0 0.0
        %919 = vmatpush2.msra.mxu0 0.0
        %920 = vmatprep.subr.mxu0 0.0
        %921 = vmatpush2.msra.mxu0 0.0
        %922 = vmatprep.subr.mxu0 0.0
        %923 = vmatpush2.msra.mxu0 0.0
        %924 = vmatprep.subr.mxu0 0.0
        %925 = vmatpush2.msra.mxu0 0.0
        %926 = vmatprep.subr.mxu0 0.0
        %927 = vmatpush2.msra.mxu0 0.0
        %928 = vmatprep.subr.mxu0 0.0
        %929 = vmatpush2.msra.mxu0 0.0
        %930 = vmatprep.subr.mxu0 0.0
        %931 = vmatpush2.msra.mxu0 0.0
        %932 = vmatprep.subr.mxu0 0.0
        %933 = vmatpush2.msra.mxu0 0.0
        %934 = vmatprep.subr.mxu0 0.0
        %935 = vmatpush2.msra.mxu0 0.0
        %936 = vmatprep.subr.mxu0 0.0
        %937 = vmatpush2.msra.mxu0 0.0
        %938 = vmatprep.subr.mxu0 0.0
        %939 = vmatpush2.msra.mxu0 0.0
        %940 = vmatprep.subr.mxu0 0.0
        %941 = vmatpush2.msra.mxu0 0.0
        %942 = vmatprep.subr.mxu0 0.0
        %943 = vmatpush2.msra.mxu0 0.0
        %944 = vmatprep.subr.mxu0 0.0
        %945 = vmatpush2.msra.mxu0 0.0
        %946 = vmatprep.subr.mxu0 0.0
        %947 = vmatpush2.msra.mxu0 0.0
        %948 = vmatprep.subr.mxu0 0.0
        %949 = vmatpush2.msra.mxu0 0.0
        %950 = vmatprep.mubr.f32.mxu0 0.0
        %951 = vmatmul.mubr.f32.gmra.mxu0 %v881
        %v952 = vpop.f32.mrf.mxu0
        %v953 = vadd.f32 0.0, %v952
        %v954 = vpop.f32.mrf.mxu0
        %955 = vmatprep.mubr.f32.mxu0 0.0
        %956 = vmatmul.mubr.f32.gmra.mxu0 %v884
        %v957 = vpop.f32.mrf.mxu0
        %v958 = vadd.f32 0.0, %v957
        %v959 = vpop.f32.mrf.mxu0
        %960 = vdwg.mxu0
        %v961 = vld [vmem:[%s504] sm:$0xff]
        %v962 = vld [vmem:[%s504 + $0x8] sm:$0xff]
        %v963 = vld [vmem:[%s504 + $0x10] sm:$0xff]
        %v964 = vld [vmem:[%s504 + $0x18] sm:$0xff]
        %v965 = vld [vmem:[%s504 + $0x20] sm:$0xff]
        %v966 = vld [vmem:[%s504 + $0x28] sm:$0xff]
        %v967 = vld [vmem:[%s504 + $0x30] sm:$0xff]
        %v968 = vld [vmem:[%s504 + $0x38] sm:$0xff]
        %v969 = vld [vmem:[%s504 + $0x40] sm:$0xff]
        %v970 = vld [vmem:[%s504 + $0x48] sm:$0xff]
        %v971 = vld [vmem:[%s504 + $0x50] sm:$0xff]
        %v972 = vld [vmem:[%s504 + $0x58] sm:$0xff]
        %v973 = vld [vmem:[%s504 + $0x60] sm:$0xff]
        %v974 = vld [vmem:[%s504 + $0x68] sm:$0xff]
        %v975 = vld [vmem:[%s504 + $0x70] sm:$0xff]
        %v976 = vld [vmem:[%s504 + $0x78] sm:$0xff]
        %v977 = vld [vmem:[%s513] sm:$0x1]
        %v979 = vlaneseq
        %v980 = vshrl.u32 %v979, 7
        %v981 = vsub.s32 0, %v980
        %v982 = vrot.slane %v977, %v981
        %984 = vmatprep.subr.mxu0 0.0
        %985 = vmatpush1.msra.mxu0 %v976
        %986 = vmatprep.subr.mxu0 0.0
        %987 = vmatpush1.msra.mxu0 %v975
        %988 = vmatprep.subr.mxu0 0.0
        %989 = vmatpush1.msra.mxu0 %v974
        %990 = vmatprep.subr.mxu0 0.0
        %991 = vmatpush1.msra.mxu0 %v973
        %992 = vmatprep.subr.mxu0 0.0
        %993 = vmatpush1.msra.mxu0 %v972
        %994 = vmatprep.subr.mxu0 0.0
        %995 = vmatpush1.msra.mxu0 %v971
        %996 = vmatprep.subr.mxu0 0.0
        %997 = vmatpush1.msra.mxu0 %v970
        %998 = vmatprep.subr.mxu0 0.0
        %999 = vmatpush1.msra.mxu0 %v969
        %1000 = vmatprep.subr.mxu0 0.0
        %1001 = vmatpush1.msra.mxu0 %v968
        %1002 = vmatprep.subr.mxu0 0.0
        %1003 = vmatpush1.msra.mxu0 %v967
        %1004 = vmatprep.subr.mxu0 0.0
        %1005 = vmatpush1.msra.mxu0 %v966
        %1006 = vmatprep.subr.mxu0 0.0
        %1007 = vmatpush1.msra.mxu0 %v965
        %1008 = vmatprep.subr.mxu0 0.0
        %1009 = vmatpush1.msra.mxu0 %v964
        %1010 = vmatprep.subr.mxu0 0.0
        %1011 = vmatpush1.msra.mxu0 %v963
        %1012 = vmatprep.subr.mxu0 0.0
        %1013 = vmatpush1.msra.mxu0 %v962
        %1014 = vmatprep.subr.mxu0 0.0
        %1015 = vmatpush1.msra.mxu0 %v961
        %1016 = vmatprep.subr.mxu0 0.0
        %1017 = vmatpush2.msra.mxu0 0.0
        %1018 = vmatprep.subr.mxu0 0.0
        %1019 = vmatpush2.msra.mxu0 0.0
        %1020 = vmatprep.subr.mxu0 0.0
        %1021 = vmatpush2.msra.mxu0 0.0
        %1022 = vmatprep.subr.mxu0 0.0
        %1023 = vmatpush2.msra.mxu0 0.0
        %1024 = vmatprep.subr.mxu0 0.0
        %1025 = vmatpush2.msra.mxu0 0.0
        %1026 = vmatprep.subr.mxu0 0.0
        %1027 = vmatpush2.msra.mxu0 0.0
        %1028 = vmatprep.subr.mxu0 0.0
        %1029 = vmatpush2.msra.mxu0 0.0
        %1030 = vmatprep.subr.mxu0 0.0
        %1031 = vmatpush2.msra.mxu0 0.0
        %1032 = vmatprep.subr.mxu0 0.0
        %1033 = vmatpush2.msra.mxu0 0.0
        %1034 = vmatprep.subr.mxu0 0.0
        %1035 = vmatpush2.msra.mxu0 0.0
        %1036 = vmatprep.subr.mxu0 0.0
        %1037 = vmatpush2.msra.mxu0 0.0
        %1038 = vmatprep.subr.mxu0 0.0
        %1039 = vmatpush2.msra.mxu0 0.0
        %1040 = vmatprep.subr.mxu0 0.0
        %1041 = vmatpush2.msra.mxu0 0.0
        %1042 = vmatprep.subr.mxu0 0.0
        %1043 = vmatpush2.msra.mxu0 0.0
        %1044 = vmatprep.subr.mxu0 0.0
        %1045 = vmatpush2.msra.mxu0 0.0
        %1046 = vmatprep.subr.mxu0 0.0
        %1047 = vmatpush2.msra.mxu0 0.0
        %1048 = vmatprep.mubr.f32.mxu0 0.0
        %1049 = vmatmul.mubr.f32.gmra.mxu0 %v872
        %v1050 = vpop.f32.mrf.mxu0
        %v1051 = vadd.f32 %v982, %v1050
        %v1052 = vpop.f32.mrf.mxu0
        %1053 = vmatprep.mubr.f32.mxu0 0.0
        %1054 = vmatmul.mubr.f32.gmra.mxu0 %v877
        %v1055 = vpop.f32.mrf.mxu0
        %v1056 = vadd.f32 %v982, %v1055
        %v1057 = vpop.f32.mrf.mxu0
        %1058 = vmatprep.mubr.f32.mxu0 0.0
        %1059 = vmatmul.mubr.f32.gmra.mxu0 %v953
        %v1060 = vpop.f32.mrf.mxu0
        %v1061 = vadd.f32 %v982, %v1060
        %v1062 = vpop.f32.mrf.mxu0
        %1063 = vmatprep.mubr.f32.mxu0 0.0
        %1064 = vmatmul.mubr.f32.gmra.mxu0 %v958
        %v1065 = vpop.f32.mrf.mxu0
        %v1066 = vadd.f32 %v982, %v1065
        %v1067 = vpop.f32.mrf.mxu0
        %1068 = vdwg.mxu0
        %v1069 = vmax.f32 %v1051, 0.0
        %v1070 = vmax.f32 %v1056, 0.0
        %v1071 = vmax.f32 %v1061, 0.0
        %v1072 = vmax.f32 %v1066, 0.0
        %v1073 = vld [vmem:[%s522] sm:$0xff]
        %v1074 = vld [vmem:[%s522 + $0x8] sm:$0xff]
        %v1075 = vld [vmem:[%s522 + $0x10] sm:$0xff]
        %v1076 = vld [vmem:[%s522 + $0x18] sm:$0xff]
        %v1077 = vld [vmem:[%s522 + $0x20] sm:$0xff]
        %v1078 = vld [vmem:[%s522 + $0x28] sm:$0xff]
        %v1079 = vld [vmem:[%s522 + $0x30] sm:$0xff]
        %v1080 = vld [vmem:[%s522 + $0x38] sm:$0xff]
        %v1081 = vld [vmem:[%s522 + $0x40] sm:$0xff]
        %v1082 = vld [vmem:[%s522 + $0x48] sm:$0xff]
        %v1083 = vld [vmem:[%s522 + $0x50] sm:$0xff]
        %v1084 = vld [vmem:[%s522 + $0x58] sm:$0xff]
        %v1085 = vld [vmem:[%s522 + $0x60] sm:$0xff]
        %v1086 = vld [vmem:[%s522 + $0x68] sm:$0xff]
        %v1087 = vld [vmem:[%s522 + $0x70] sm:$0xff]
        %v1088 = vld [vmem:[%s522 + $0x78] sm:$0xff]
        %v1089 = vld [vmem:[%s531] sm:$0x1]
        %v1091 = vlaneseq
        %v1092 = vshrl.u32 %v1091, 7
        %v1093 = vsub.s32 0, %v1092
        %v1094 = vrot.slane %v1089, %v1093
        %1096 = vmatprep.subr.mxu0 0.0
        %1097 = vmatpush1.msra.mxu0 %v1088
        %1098 = vmatprep.subr.mxu0 0.0
        %1099 = vmatpush1.msra.mxu0 %v1087
        %1100 = vmatprep.subr.mxu0 0.0
        %1101 = vmatpush1.msra.mxu0 %v1086
        %1102 = vmatprep.subr.mxu0 0.0
        %1103 = vmatpush1.msra.mxu0 %v1085
        %1104 = vmatprep.subr.mxu0 0.0
        %1105 = vmatpush1.msra.mxu0 %v1084
        %1106 = vmatprep.subr.mxu0 0.0
        %1107 = vmatpush1.msra.mxu0 %v1083
        %1108 = vmatprep.subr.mxu0 0.0
        %1109 = vmatpush1.msra.mxu0 %v1082
        %1110 = vmatprep.subr.mxu0 0.0
        %1111 = vmatpush1.msra.mxu0 %v1081
        %1112 = vmatprep.subr.mxu0 0.0
        %1113 = vmatpush1.msra.mxu0 %v1080
        %1114 = vmatprep.subr.mxu0 0.0
        %1115 = vmatpush1.msra.mxu0 %v1079
        %1116 = vmatprep.subr.mxu0 0.0
        %1117 = vmatpush1.msra.mxu0 %v1078
        %1118 = vmatprep.subr.mxu0 0.0
        %1119 = vmatpush1.msra.mxu0 %v1077
        %1120 = vmatprep.subr.mxu0 0.0
        %1121 = vmatpush1.msra.mxu0 %v1076
        %1122 = vmatprep.subr.mxu0 0.0
        %1123 = vmatpush1.msra.mxu0 %v1075
        %1124 = vmatprep.subr.mxu0 0.0
        %1125 = vmatpush1.msra.mxu0 %v1074
        %1126 = vmatprep.subr.mxu0 0.0
        %1127 = vmatpush1.msra.mxu0 %v1073
        %1128 = vmatprep.subr.mxu0 0.0
        %1129 = vmatpush2.msra.mxu0 0.0
        %1130 = vmatprep.subr.mxu0 0.0
        %1131 = vmatpush2.msra.mxu0 0.0
        %1132 = vmatprep.subr.mxu0 0.0
        %1133 = vmatpush2.msra.mxu0 0.0
        %1134 = vmatprep.subr.mxu0 0.0
        %1135 = vmatpush2.msra.mxu0 0.0
        %1136 = vmatprep.subr.mxu0 0.0
        %1137 = vmatpush2.msra.mxu0 0.0
        %1138 = vmatprep.subr.mxu0 0.0
        %1139 = vmatpush2.msra.mxu0 0.0
        %1140 = vmatprep.subr.mxu0 0.0
        %1141 = vmatpush2.msra.mxu0 0.0
        %1142 = vmatprep.subr.mxu0 0.0
        %1143 = vmatpush2.msra.mxu0 0.0
        %1144 = vmatprep.subr.mxu0 0.0
        %1145 = vmatpush2.msra.mxu0 0.0
        %1146 = vmatprep.subr.mxu0 0.0
        %1147 = vmatpush2.msra.mxu0 0.0
        %1148 = vmatprep.subr.mxu0 0.0
        %1149 = vmatpush2.msra.mxu0 0.0
        %1150 = vmatprep.subr.mxu0 0.0
        %1151 = vmatpush2.msra.mxu0 0.0
        %1152 = vmatprep.subr.mxu0 0.0
        %1153 = vmatpush2.msra.mxu0 0.0
        %1154 = vmatprep.subr.mxu0 0.0
        %1155 = vmatpush2.msra.mxu0 0.0
        %1156 = vmatprep.subr.mxu0 0.0
        %1157 = vmatpush2.msra.mxu0 0.0
        %1158 = vmatprep.subr.mxu0 0.0
        %1159 = vmatpush2.msra.mxu0 0.0
        %1160 = vmatprep.mubr.f32.mxu0 0.0
        %1161 = vmatmul.mubr.f32.gmra.mxu0 %v1069
        %v1162 = vpop.f32.mrf.mxu0
        %v1163 = vadd.f32 %v1094, %v1162
        %v1164 = vpop.f32.mrf.mxu0
        %1165 = vmatprep.mubr.f32.mxu0 0.0
        %1166 = vmatmul.mubr.f32.gmra.mxu0 %v1070
        %v1167 = vpop.f32.mrf.mxu0
        %v1168 = vadd.f32 %v1094, %v1167
        %v1169 = vpop.f32.mrf.mxu0
        %1170 = vmatprep.mubr.f32.mxu0 0.0
        %1171 = vmatmul.mubr.f32.gmra.mxu0 %v1071
        %v1172 = vpop.f32.mrf.mxu0
        %v1173 = vadd.f32 %v1094, %v1172
        %v1174 = vpop.f32.mrf.mxu0
        %1175 = vmatprep.mubr.f32.mxu0 0.0
        %1176 = vmatmul.mubr.f32.gmra.mxu0 %v1072
        %v1177 = vpop.f32.mrf.mxu0
        %v1178 = vadd.f32 %v1094, %v1177
        %v1179 = vpop.f32.mrf.mxu0
        %1180 = vdwg.mxu0
        %v1181 = vmax.f32 %v1163, 0.0
        %v1182 = vmax.f32 %v1168, 0.0
        %v1183 = vmax.f32 %v1173, 0.0
        %v1184 = vmax.f32 %v1178, 0.0
        %1185 = vmatprep.subr.mxu0 0.0
        %1186 = vmatpush1.msra.mxu0 0.0
        %1187 = vmatprep.subr.mxu0 0.0
        %1188 = vmatpush1.msra.mxu0 0.0
        %1189 = vmatprep.subr.mxu0 0.0
        %1190 = vmatpush1.msra.mxu0 0.0
        %1191 = vmatprep.subr.mxu0 0.0
        %1192 = vmatpush1.msra.mxu0 0.0
        %1193 = vmatprep.subr.mxu0 0.0
        %1194 = vmatpush1.msra.mxu0 0.0
        %1195 = vmatprep.subr.mxu0 0.0
        %1196 = vmatpush1.msra.mxu0 0.0
        %1197 = vmatprep.subr.mxu0 0.0
        %1198 = vmatpush1.msra.mxu0 0.0
        %1199 = vmatprep.subr.mxu0 0.0
        %1200 = vmatpush1.msra.mxu0 0.0
        %1201 = vmatprep.subr.mxu0 0.0
        %1202 = vmatpush1.msra.mxu0 0.0
        %1203 = vmatprep.subr.mxu0 0.0
        %1204 = vmatpush1.msra.mxu0 0.0
        %1205 = vmatprep.subr.mxu0 0.0
        %1206 = vmatpush1.msra.mxu0 0.0
        %1207 = vmatprep.subr.mxu0 0.0
        %1208 = vmatpush1.msra.mxu0 0.0
        %1209 = vmatprep.subr.mxu0 0.0
        %1210 = vmatpush1.msra.mxu0 %v1184
        %1211 = vmatprep.subr.mxu0 0.0
        %1212 = vmatpush1.msra.mxu0 %v1183
        %1213 = vmatprep.subr.mxu0 0.0
        %1214 = vmatpush1.msra.mxu0 %v1182
        %1215 = vmatprep.subr.mxu0 0.0
        %1216 = vmatpush1.msra.mxu0 %v1181
        %1217 = vmatprep.subr.mxu0 0.0
        %1218 = vmatpush2.msra.mxu0 0.0
        %1219 = vmatprep.subr.mxu0 0.0
        %1220 = vmatpush2.msra.mxu0 0.0
        %1221 = vmatprep.subr.mxu0 0.0
        %1222 = vmatpush2.msra.mxu0 0.0
        %1223 = vmatprep.subr.mxu0 0.0
        %1224 = vmatpush2.msra.mxu0 0.0
        %1225 = vmatprep.subr.mxu0 0.0
        %1226 = vmatpush2.msra.mxu0 0.0
        %1227 = vmatprep.subr.mxu0 0.0
        %1228 = vmatpush2.msra.mxu0 0.0
        %1229 = vmatprep.subr.mxu0 0.0
        %1230 = vmatpush2.msra.mxu0 0.0
        %1231 = vmatprep.subr.mxu0 0.0
        %1232 = vmatpush2.msra.mxu0 0.0
        %1233 = vmatprep.subr.mxu0 0.0
        %1234 = vmatpush2.msra.mxu0 0.0
        %1235 = vmatprep.subr.mxu0 0.0
        %1236 = vmatpush2.msra.mxu0 0.0
        %1237 = vmatprep.subr.mxu0 0.0
        %1238 = vmatpush2.msra.mxu0 0.0
        %1239 = vmatprep.subr.mxu0 0.0
        %1240 = vmatpush2.msra.mxu0 0.0
        %1241 = vmatprep.subr.mxu0 0.0
        %1242 = vmatpush2.msra.mxu0 0.0
        %1243 = vmatprep.subr.mxu0 0.0
        %1244 = vmatpush2.msra.mxu0 0.0
        %1245 = vmatprep.subr.mxu0 0.0
        %1246 = vmatpush2.msra.mxu0 0.0
        %1247 = vmatprep.subr.mxu0 0.0
        %1248 = vmatpush2.msra.mxu0 0.0
        %1249 = vmatprep.mubr.f32.mxu0 0.0
        %1250 = vmatmul.mubr.f32.gmra.mxu0 %v633
        %v1251 = vpop.f32.mrf.mxu0
        %v1252 = vadd.f32 0.0, %v1251
        %v1253 = vpop.f32.mrf.mxu0
        %1254 = vdwg.mxu0
        %s1255 = scalar_lea.vmem %s540, 128 [#allocation12]
        %v1256 = vld [vmem:[%s1255] sm:$0xff]
        %v1257 = vld [vmem:[%s1255 + $0x8] sm:$0xff]
        %v1258 = vld [vmem:[%s1255 + $0x10] sm:$0xff]
        %v1259 = vld [vmem:[%s1255 + $0x18] sm:$0xff]
        %v1260 = vld [vmem:[%s1255 + $0x20] sm:$0xff]
        %v1261 = vld [vmem:[%s1255 + $0x28] sm:$0xff]
        %v1262 = vld [vmem:[%s1255 + $0x30] sm:$0xff]
        %v1263 = vld [vmem:[%s1255 + $0x38] sm:$0xff]
        %v1264 = vld [vmem:[%s1255 + $0x40] sm:$0xff]
        %v1265 = vld [vmem:[%s1255 + $0x48] sm:$0xff]
        %v1266 = vld [vmem:[%s1255 + $0x50] sm:$0xff]
        %v1267 = vld [vmem:[%s1255 + $0x58] sm:$0xff]
        %v1268 = vld [vmem:[%s1255 + $0x60] sm:$0xff]
        %v1269 = vld [vmem:[%s1255 + $0x68] sm:$0xff]
        %v1270 = vld [vmem:[%s1255 + $0x70] sm:$0xff]
        %v1271 = vld [vmem:[%s1255 + $0x78] sm:$0xff]
        %s1272 = scalar_lea.vmem %s549, 1 [#allocation13]
        %v1273 = vld [vmem:[%s1272] sm:$0x1]
        %v1275 = vlaneseq
        %v1276 = vshrl.u32 %v1275, 7
        %v1277 = vsub.s32 0, %v1276
        %v1278 = vrot.slane %v1273, %v1277
        %1280 = vmatprep.subr.mxu0 0.0
        %1281 = vmatpush1.msra.mxu0 %v1271
        %1282 = vmatprep.subr.mxu0 0.0
        %1283 = vmatpush1.msra.mxu0 %v1270
        %1284 = vmatprep.subr.mxu0 0.0
        %1285 = vmatpush1.msra.mxu0 %v1269
        %1286 = vmatprep.subr.mxu0 0.0
        %1287 = vmatpush1.msra.mxu0 %v1268
        %1288 = vmatprep.subr.mxu0 0.0
        %1289 = vmatpush1.msra.mxu0 %v1267
        %1290 = vmatprep.subr.mxu0 0.0
        %1291 = vmatpush1.msra.mxu0 %v1266
        %1292 = vmatprep.subr.mxu0 0.0
        %1293 = vmatpush1.msra.mxu0 %v1265
        %1294 = vmatprep.subr.mxu0 0.0
        %1295 = vmatpush1.msra.mxu0 %v1264
        %1296 = vmatprep.subr.mxu0 0.0
        %1297 = vmatpush1.msra.mxu0 %v1263
        %1298 = vmatprep.subr.mxu0 0.0
        %1299 = vmatpush1.msra.mxu0 %v1262
        %1300 = vmatprep.subr.mxu0 0.0
        %1301 = vmatpush1.msra.mxu0 %v1261
        %1302 = vmatprep.subr.mxu0 0.0
        %1303 = vmatpush1.msra.mxu0 %v1260
        %1304 = vmatprep.subr.mxu0 0.0
        %1305 = vmatpush1.msra.mxu0 %v1259
        %1306 = vmatprep.subr.mxu0 0.0
        %1307 = vmatpush1.msra.mxu0 %v1258
        %1308 = vmatprep.subr.mxu0 0.0
        %1309 = vmatpush1.msra.mxu0 %v1257
        %1310 = vmatprep.subr.mxu0 0.0
        %1311 = vmatpush1.msra.mxu0 %v1256
        %1312 = vmatprep.subr.mxu0 0.0
        %1313 = vmatpush2.msra.mxu0 0.0
        %1314 = vmatprep.subr.mxu0 0.0
        %1315 = vmatpush2.msra.mxu0 0.0
        %1316 = vmatprep.subr.mxu0 0.0
        %1317 = vmatpush2.msra.mxu0 0.0
        %1318 = vmatprep.subr.mxu0 0.0
        %1319 = vmatpush2.msra.mxu0 0.0
        %1320 = vmatprep.subr.mxu0 0.0
        %1321 = vmatpush2.msra.mxu0 0.0
        %1322 = vmatprep.subr.mxu0 0.0
        %1323 = vmatpush2.msra.mxu0 0.0
        %1324 = vmatprep.subr.mxu0 0.0
        %1325 = vmatpush2.msra.mxu0 0.0
        %1326 = vmatprep.subr.mxu0 0.0
        %1327 = vmatpush2.msra.mxu0 0.0
        %1328 = vmatprep.subr.mxu0 0.0
        %1329 = vmatpush2.msra.mxu0 0.0
        %1330 = vmatprep.subr.mxu0 0.0
        %1331 = vmatpush2.msra.mxu0 0.0
        %1332 = vmatprep.subr.mxu0 0.0
        %1333 = vmatpush2.msra.mxu0 0.0
        %1334 = vmatprep.subr.mxu0 0.0
        %1335 = vmatpush2.msra.mxu0 0.0
        %1336 = vmatprep.subr.mxu0 0.0
        %1337 = vmatpush2.msra.mxu0 0.0
        %1338 = vmatprep.subr.mxu0 0.0
        %1339 = vmatpush2.msra.mxu0 0.0
        %1340 = vmatprep.subr.mxu0 0.0
        %1341 = vmatpush2.msra.mxu0 0.0
        %1342 = vmatprep.subr.mxu0 0.0
        %1343 = vmatpush2.msra.mxu0 0.0
        %1344 = vmatprep.mubr.f32.mxu0 0.0
        %1345 = vmatmul.mubr.f32.gmra.mxu0 %v1252
        %v1346 = vpop.f32.mrf.mxu0
        %v1347 = vadd.f32 %v1278, %v1346
        %v1348 = vpop.f32.mrf.mxu0
        %1349 = vdwg.mxu0
        %v1350 = vadd.f32 %v795, %v1347
        %1351 = vmatprep.subr.mxu0 0.0
        %1352 = vmatpush1.msra.mxu0 0.0
        %1353 = vmatprep.subr.mxu0 0.0
        %1354 = vmatpush1.msra.mxu0 0.0
        %1355 = vmatprep.subr.mxu0 0.0
        %1356 = vmatpush1.msra.mxu0 0.0
        %1357 = vmatprep.subr.mxu0 0.0
        %1358 = vmatpush1.msra.mxu0 0.0
        %1359 = vmatprep.subr.mxu0 0.0
        %1360 = vmatpush1.msra.mxu0 0.0
        %1361 = vmatprep.subr.mxu0 0.0
        %1362 = vmatpush1.msra.mxu0 0.0
        %1363 = vmatprep.subr.mxu0 0.0
        %1364 = vmatpush1.msra.mxu0 0.0
        %1365 = vmatprep.subr.mxu0 0.0
        %1366 = vmatpush1.msra.mxu0 0.0
        %1367 = vmatprep.subr.mxu0 0.0
        %1368 = vmatpush1.msra.mxu0 0.0
        %1369 = vmatprep.subr.mxu0 0.0
        %1370 = vmatpush1.msra.mxu0 0.0
        %1371 = vmatprep.subr.mxu0 0.0
        %1372 = vmatpush1.msra.mxu0 0.0
        %1373 = vmatprep.subr.mxu0 0.0
        %1374 = vmatpush1.msra.mxu0 0.0
        %1375 = vmatprep.subr.mxu0 0.0
        %1376 = vmatpush1.msra.mxu0 0.0
        %1377 = vmatprep.subr.mxu0 0.0
        %1378 = vmatpush1.msra.mxu0 0.0
        %1379 = vmatprep.subr.mxu0 0.0
        %1380 = vmatpush1.msra.mxu0 %v1182
        %1381 = vmatprep.subr.mxu0 0.0
        %1382 = vmatpush1.msra.mxu0 %v1181
        %1383 = vmatprep.subr.mxu0 0.0
        %1384 = vmatpush2.msra.mxu0 0.0
        %1385 = vmatprep.subr.mxu0 0.0
        %1386 = vmatpush2.msra.mxu0 0.0
        %1387 = vmatprep.subr.mxu0 0.0
        %1388 = vmatpush2.msra.mxu0 0.0
        %1389 = vmatprep.subr.mxu0 0.0
        %1390 = vmatpush2.msra.mxu0 0.0
        %1391 = vmatprep.subr.mxu0 0.0
        %1392 = vmatpush2.msra.mxu0 0.0
        %1393 = vmatprep.subr.mxu0 0.0
        %1394 = vmatpush2.msra.mxu0 0.0
        %1395 = vmatprep.subr.mxu0 0.0
        %1396 = vmatpush2.msra.mxu0 0.0
        %1397 = vmatprep.subr.mxu0 0.0
        %1398 = vmatpush2.msra.mxu0 0.0
        %1399 = vmatprep.subr.mxu0 0.0
        %1400 = vmatpush2.msra.mxu0 0.0
        %1401 = vmatprep.subr.mxu0 0.0
        %1402 = vmatpush2.msra.mxu0 0.0
        %1403 = vmatprep.subr.mxu0 0.0
        %1404 = vmatpush2.msra.mxu0 0.0
        %1405 = vmatprep.subr.mxu0 0.0
        %1406 = vmatpush2.msra.mxu0 0.0
        %1407 = vmatprep.subr.mxu0 0.0
        %1408 = vmatpush2.msra.mxu0 0.0
        %1409 = vmatprep.subr.mxu0 0.0
        %1410 = vmatpush2.msra.mxu0 0.0
        %1411 = vmatprep.subr.mxu0 0.0
        %1412 = vmatpush2.msra.mxu0 0.0
        %1413 = vmatprep.subr.mxu0 0.0
        %1414 = vmatpush2.msra.mxu0 0.0
        %1415 = vmatprep.mubr.f32.mxu0 0.0
        %1416 = vmatmul.mubr.f32.gmra.mxu0 %v800
        %v1417 = vpop.f32.mrf.mxu0
        %v1418 = vadd.f32 0.0, %v1417
        %v1419 = vpop.f32.mrf.mxu0
        %1420 = vmatprep.mubr.f32.mxu0 0.0
        %1421 = vmatmul.mubr.f32.gmra.mxu0 %v803
        %v1422 = vpop.f32.mrf.mxu0
        %v1423 = vadd.f32 0.0, %v1422
        %v1424 = vpop.f32.mrf.mxu0
        %1425 = vdwg.mxu0
        %1426 = vmatprep.subr.mxu0 0.0
        %1427 = vmatpush1.msra.mxu0 0.0
        %1428 = vmatprep.subr.mxu0 0.0
        %1429 = vmatpush1.msra.mxu0 0.0
        %1430 = vmatprep.subr.mxu0 0.0
        %1431 = vmatpush1.msra.mxu0 0.0
        %1432 = vmatprep.subr.mxu0 0.0
        %1433 = vmatpush1.msra.mxu0 0.0
        %1434 = vmatprep.subr.mxu0 0.0
        %1435 = vmatpush1.msra.mxu0 0.0
        %1436 = vmatprep.subr.mxu0 0.0
        %1437 = vmatpush1.msra.mxu0 0.0
        %1438 = vmatprep.subr.mxu0 0.0
        %1439 = vmatpush1.msra.mxu0 0.0
        %1440 = vmatprep.subr.mxu0 0.0
        %1441 = vmatpush1.msra.mxu0 0.0
        %1442 = vmatprep.subr.mxu0 0.0
        %1443 = vmatpush1.msra.mxu0 0.0
        %1444 = vmatprep.subr.mxu0 0.0
        %1445 = vmatpush1.msra.mxu0 0.0
        %1446 = vmatprep.subr.mxu0 0.0
        %1447 = vmatpush1.msra.mxu0 0.0
        %1448 = vmatprep.subr.mxu0 0.0
        %1449 = vmatpush1.msra.mxu0 0.0
        %1450 = vmatprep.subr.mxu0 0.0
        %1451 = vmatpush1.msra.mxu0 0.0
        %1452 = vmatprep.subr.mxu0 0.0
        %1453 = vmatpush1.msra.mxu0 0.0
        %1454 = vmatprep.subr.mxu0 0.0
        %1455 = vmatpush1.msra.mxu0 %v1184
        %1456 = vmatprep.subr.mxu0 0.0
        %1457 = vmatpush1.msra.mxu0 %v1183
        %1458 = vmatprep.subr.mxu0 0.0
        %1459 = vmatpush2.msra.mxu0 0.0
        %1460 = vmatprep.subr.mxu0 0.0
        %1461 = vmatpush2.msra.mxu0 0.0
        %1462 = vmatprep.subr.mxu0 0.0
        %1463 = vmatpush2.msra.mxu0 0.0
        %1464 = vmatprep.subr.mxu0 0.0
        %1465 = vmatpush2.msra.mxu0 0.0
        %1466 = vmatprep.subr.mxu0 0.0
        %1467 = vmatpush2.msra.mxu0 0.0
        %1468 = vmatprep.subr.mxu0 0.0
        %1469 = vmatpush2.msra.mxu0 0.0
        %1470 = vmatprep.subr.mxu0 0.0
        %1471 = vmatpush2.msra.mxu0 0.0
        %1472 = vmatprep.subr.mxu0 0.0
        %1473 = vmatpush2.msra.mxu0 0.0
        %1474 = vmatprep.subr.mxu0 0.0
        %1475 = vmatpush2.msra.mxu0 0.0
        %1476 = vmatprep.subr.mxu0 0.0
        %1477 = vmatpush2.msra.mxu0 0.0
        %1478 = vmatprep.subr.mxu0 0.0
        %1479 = vmatpush2.msra.mxu0 0.0
        %1480 = vmatprep.subr.mxu0 0.0
        %1481 = vmatpush2.msra.mxu0 0.0
        %1482 = vmatprep.subr.mxu0 0.0
        %1483 = vmatpush2.msra.mxu0 0.0
        %1484 = vmatprep.subr.mxu0 0.0
        %1485 = vmatpush2.msra.mxu0 0.0
        %1486 = vmatprep.subr.mxu0 0.0
        %1487 = vmatpush2.msra.mxu0 0.0
        %1488 = vmatprep.subr.mxu0 0.0
        %1489 = vmatpush2.msra.mxu0 0.0
        %1490 = vmatprep.mubr.f32.mxu0 0.0
        %1491 = vmatmul.mubr.f32.gmra.mxu0 %v881
        %v1492 = vpop.f32.mrf.mxu0
        %v1493 = vadd.f32 0.0, %v1492
        %v1494 = vpop.f32.mrf.mxu0
        %1495 = vmatprep.mubr.f32.mxu0 0.0
        %1496 = vmatmul.mubr.f32.gmra.mxu0 %v884
        %v1497 = vpop.f32.mrf.mxu0
        %v1498 = vadd.f32 0.0, %v1497
        %v1499 = vpop.f32.mrf.mxu0
        %1500 = vdwg.mxu0
        %s1501 = scalar_lea.vmem %s504, 128 [#allocation6]
        %v1502 = vld [vmem:[%s1501] sm:$0xff]
        %v1503 = vld [vmem:[%s1501 + $0x8] sm:$0xff]
        %v1504 = vld [vmem:[%s1501 + $0x10] sm:$0xff]
        %v1505 = vld [vmem:[%s1501 + $0x18] sm:$0xff]
        %v1506 = vld [vmem:[%s1501 + $0x20] sm:$0xff]
        %v1507 = vld [vmem:[%s1501 + $0x28] sm:$0xff]
        %v1508 = vld [vmem:[%s1501 + $0x30] sm:$0xff]
        %v1509 = vld [vmem:[%s1501 + $0x38] sm:$0xff]
        %v1510 = vld [vmem:[%s1501 + $0x40] sm:$0xff]
        %v1511 = vld [vmem:[%s1501 + $0x48] sm:$0xff]
        %v1512 = vld [vmem:[%s1501 + $0x50] sm:$0xff]
        %v1513 = vld [vmem:[%s1501 + $0x58] sm:$0xff]
        %v1514 = vld [vmem:[%s1501 + $0x60] sm:$0xff]
        %v1515 = vld [vmem:[%s1501 + $0x68] sm:$0xff]
        %v1516 = vld [vmem:[%s1501 + $0x70] sm:$0xff]
        %v1517 = vld [vmem:[%s1501 + $0x78] sm:$0xff]
        %s1518 = scalar_lea.vmem %s513, 1 [#allocation7]
        %v1519 = vld [vmem:[%s1518] sm:$0x1]
        %v1521 = vlaneseq
        %v1522 = vshrl.u32 %v1521, 7
        %v1523 = vsub.s32 0, %v1522
        %v1524 = vrot.slane %v1519, %v1523
        %1526 = vmatprep.subr.mxu0 0.0
        %1527 = vmatpush1.msra.mxu0 %v1517
        %1528 = vmatprep.subr.mxu0 0.0
        %1529 = vmatpush1.msra.mxu0 %v1516
        %1530 = vmatprep.subr.mxu0 0.0
        %1531 = vmatpush1.msra.mxu0 %v1515
        %1532 = vmatprep.subr.mxu0 0.0
        %1533 = vmatpush1.msra.mxu0 %v1514
        %1534 = vmatprep.subr.mxu0 0.0
        %1535 = vmatpush1.msra.mxu0 %v1513
        %1536 = vmatprep.subr.mxu0 0.0
        %1537 = vmatpush1.msra.mxu0 %v1512
        %1538 = vmatprep.subr.mxu0 0.0
        %1539 = vmatpush1.msra.mxu0 %v1511
        %1540 = vmatprep.subr.mxu0 0.0
        %1541 = vmatpush1.msra.mxu0 %v1510
        %1542 = vmatprep.subr.mxu0 0.0
        %1543 = vmatpush1.msra.mxu0 %v1509
        %1544 = vmatprep.subr.mxu0 0.0
        %1545 = vmatpush1.msra.mxu0 %v1508
        %1546 = vmatprep.subr.mxu0 0.0
        %1547 = vmatpush1.msra.mxu0 %v1507
        %1548 = vmatprep.subr.mxu0 0.0
        %1549 = vmatpush1.msra.mxu0 %v1506
        %1550 = vmatprep.subr.mxu0 0.0
        %1551 = vmatpush1.msra.mxu0 %v1505
        %1552 = vmatprep.subr.mxu0 0.0
        %1553 = vmatpush1.msra.mxu0 %v1504
        %1554 = vmatprep.subr.mxu0 0.0
        %1555 = vmatpush1.msra.mxu0 %v1503
        %1556 = vmatprep.subr.mxu0 0.0
        %1557 = vmatpush1.msra.mxu0 %v1502
        %1558 = vmatprep.subr.mxu0 0.0
        %1559 = vmatpush2.msra.mxu0 0.0
        %1560 = vmatprep.subr.mxu0 0.0
        %1561 = vmatpush2.msra.mxu0 0.0
        %1562 = vmatprep.subr.mxu0 0.0
        %1563 = vmatpush2.msra.mxu0 0.0
        %1564 = vmatprep.subr.mxu0 0.0
        %1565 = vmatpush2.msra.mxu0 0.0
        %1566 = vmatprep.subr.mxu0 0.0
        %1567 = vmatpush2.msra.mxu0 0.0
        %1568 = vmatprep.subr.mxu0 0.0
        %1569 = vmatpush2.msra.mxu0 0.0
        %1570 = vmatprep.subr.mxu0 0.0
        %1571 = vmatpush2.msra.mxu0 0.0
        %1572 = vmatprep.subr.mxu0 0.0
        %1573 = vmatpush2.msra.mxu0 0.0
        %1574 = vmatprep.subr.mxu0 0.0
        %1575 = vmatpush2.msra.mxu0 0.0
        %1576 = vmatprep.subr.mxu0 0.0
        %1577 = vmatpush2.msra.mxu0 0.0
        %1578 = vmatprep.subr.mxu0 0.0
        %1579 = vmatpush2.msra.mxu0 0.0
        %1580 = vmatprep.subr.mxu0 0.0
        %1581 = vmatpush2.msra.mxu0 0.0
        %1582 = vmatprep.subr.mxu0 0.0
        %1583 = vmatpush2.msra.mxu0 0.0
        %1584 = vmatprep.subr.mxu0 0.0
        %1585 = vmatpush2.msra.mxu0 0.0
        %1586 = vmatprep.subr.mxu0 0.0
        %1587 = vmatpush2.msra.mxu0 0.0
        %1588 = vmatprep.subr.mxu0 0.0
        %1589 = vmatpush2.msra.mxu0 0.0
        %1590 = vmatprep.mubr.f32.mxu0 0.0
        %1591 = vmatmul.mubr.f32.gmra.mxu0 %v1418
        %v1592 = vpop.f32.mrf.mxu0
        %v1593 = vadd.f32 %v1524, %v1592
        %v1594 = vpop.f32.mrf.mxu0
        %1595 = vmatprep.mubr.f32.mxu0 0.0
        %1596 = vmatmul.mubr.f32.gmra.mxu0 %v1423
        %v1597 = vpop.f32.mrf.mxu0
        %v1598 = vadd.f32 %v1524, %v1597
        %v1599 = vpop.f32.mrf.mxu0
        %1600 = vmatprep.mubr.f32.mxu0 0.0
        %1601 = vmatmul.mubr.f32.gmra.mxu0 %v1493
        %v1602 = vpop.f32.mrf.mxu0
        %v1603 = vadd.f32 %v1524, %v1602
        %v1604 = vpop.f32.mrf.mxu0
        %1605 = vmatprep.mubr.f32.mxu0 0.0
        %1606 = vmatmul.mubr.f32.gmra.mxu0 %v1498
        %v1607 = vpop.f32.mrf.mxu0
        %v1608 = vadd.f32 %v1524, %v1607
        %v1609 = vpop.f32.mrf.mxu0
        %1610 = vdwg.mxu0
        %v1611 = vmax.f32 %v1593, 0.0
        %v1612 = vmax.f32 %v1598, 0.0
        %v1613 = vmax.f32 %v1603, 0.0
        %v1614 = vmax.f32 %v1608, 0.0
        %s1615 = scalar_lea.vmem %s522, 128 [#allocation9]
        %v1616 = vld [vmem:[%s1615] sm:$0xff]
        %v1617 = vld [vmem:[%s1615 + $0x8] sm:$0xff]
        %v1618 = vld [vmem:[%s1615 + $0x10] sm:$0xff]
        %v1619 = vld [vmem:[%s1615 + $0x18] sm:$0xff]
        %v1620 = vld [vmem:[%s1615 + $0x20] sm:$0xff]
        %v1621 = vld [vmem:[%s1615 + $0x28] sm:$0xff]
        %v1622 = vld [vmem:[%s1615 + $0x30] sm:$0xff]
        %v1623 = vld [vmem:[%s1615 + $0x38] sm:$0xff]
        %v1624 = vld [vmem:[%s1615 + $0x40] sm:$0xff]
        %v1625 = vld [vmem:[%s1615 + $0x48] sm:$0xff]
        %v1626 = vld [vmem:[%s1615 + $0x50] sm:$0xff]
        %v1627 = vld [vmem:[%s1615 + $0x58] sm:$0xff]
        %v1628 = vld [vmem:[%s1615 + $0x60] sm:$0xff]
        %v1629 = vld [vmem:[%s1615 + $0x68] sm:$0xff]
        %v1630 = vld [vmem:[%s1615 + $0x70] sm:$0xff]
        %v1631 = vld [vmem:[%s1615 + $0x78] sm:$0xff]
        %s1632 = scalar_lea.vmem %s531, 1 [#allocation10]
        %v1633 = vld [vmem:[%s1632] sm:$0x1]
        %v1635 = vlaneseq
        %v1636 = vshrl.u32 %v1635, 7
        %v1637 = vsub.s32 0, %v1636
        %v1638 = vrot.slane %v1633, %v1637
        %1640 = vmatprep.subr.mxu0 0.0
        %1641 = vmatpush1.msra.mxu0 %v1631
        %1642 = vmatprep.subr.mxu0 0.0
        %1643 = vmatpush1.msra.mxu0 %v1630
        %1644 = vmatprep.subr.mxu0 0.0
        %1645 = vmatpush1.msra.mxu0 %v1629
        %1646 = vmatprep.subr.mxu0 0.0
        %1647 = vmatpush1.msra.mxu0 %v1628
        %1648 = vmatprep.subr.mxu0 0.0
        %1649 = vmatpush1.msra.mxu0 %v1627
        %1650 = vmatprep.subr.mxu0 0.0
        %1651 = vmatpush1.msra.mxu0 %v1626
        %1652 = vmatprep.subr.mxu0 0.0
        %1653 = vmatpush1.msra.mxu0 %v1625
        %1654 = vmatprep.subr.mxu0 0.0
        %1655 = vmatpush1.msra.mxu0 %v1624
        %1656 = vmatprep.subr.mxu0 0.0
        %1657 = vmatpush1.msra.mxu0 %v1623
        %1658 = vmatprep.subr.mxu0 0.0
        %1659 = vmatpush1.msra.mxu0 %v1622
        %1660 = vmatprep.subr.mxu0 0.0
        %1661 = vmatpush1.msra.mxu0 %v1621
        %1662 = vmatprep.subr.mxu0 0.0
        %1663 = vmatpush1.msra.mxu0 %v1620
        %1664 = vmatprep.subr.mxu0 0.0
        %1665 = vmatpush1.msra.mxu0 %v1619
        %1666 = vmatprep.subr.mxu0 0.0
        %1667 = vmatpush1.msra.mxu0 %v1618
        %1668 = vmatprep.subr.mxu0 0.0
        %1669 = vmatpush1.msra.mxu0 %v1617
        %1670 = vmatprep.subr.mxu0 0.0
        %1671 = vmatpush1.msra.mxu0 %v1616
        %1672 = vmatprep.subr.mxu0 0.0
        %1673 = vmatpush2.msra.mxu0 0.0
        %1674 = vmatprep.subr.mxu0 0.0
        %1675 = vmatpush2.msra.mxu0 0.0
        %1676 = vmatprep.subr.mxu0 0.0
        %1677 = vmatpush2.msra.mxu0 0.0
        %1678 = vmatprep.subr.mxu0 0.0
        %1679 = vmatpush2.msra.mxu0 0.0
        %1680 = vmatprep.subr.mxu0 0.0
        %1681 = vmatpush2.msra.mxu0 0.0
        %1682 = vmatprep.subr.mxu0 0.0
        %1683 = vmatpush2.msra.mxu0 0.0
        %1684 = vmatprep.subr.mxu0 0.0
        %1685 = vmatpush2.msra.mxu0 0.0
        %1686 = vmatprep.subr.mxu0 0.0
        %1687 = vmatpush2.msra.mxu0 0.0
        %1688 = vmatprep.subr.mxu0 0.0
        %1689 = vmatpush2.msra.mxu0 0.0
        %1690 = vmatprep.subr.mxu0 0.0
        %1691 = vmatpush2.msra.mxu0 0.0
        %1692 = vmatprep.subr.mxu0 0.0
        %1693 = vmatpush2.msra.mxu0 0.0
        %1694 = vmatprep.subr.mxu0 0.0
        %1695 = vmatpush2.msra.mxu0 0.0
        %1696 = vmatprep.subr.mxu0 0.0
        %1697 = vmatpush2.msra.mxu0 0.0
        %1698 = vmatprep.subr.mxu0 0.0
        %1699 = vmatpush2.msra.mxu0 0.0
        %1700 = vmatprep.subr.mxu0 0.0
        %1701 = vmatpush2.msra.mxu0 0.0
        %1702 = vmatprep.subr.mxu0 0.0
        %1703 = vmatpush2.msra.mxu0 0.0
        %1704 = vmatprep.mubr.f32.mxu0 0.0
        %1705 = vmatmul.mubr.f32.gmra.mxu0 %v1611
        %v1706 = vpop.f32.mrf.mxu0
        %v1707 = vadd.f32 %v1638, %v1706
        %v1708 = vpop.f32.mrf.mxu0
        %1709 = vmatprep.mubr.f32.mxu0 0.0
        %1710 = vmatmul.mubr.f32.gmra.mxu0 %v1612
        %v1711 = vpop.f32.mrf.mxu0
        %v1712 = vadd.f32 %v1638, %v1711
        %v1713 = vpop.f32.mrf.mxu0
        %1714 = vmatprep.mubr.f32.mxu0 0.0
        %1715 = vmatmul.mubr.f32.gmra.mxu0 %v1613
        %v1716 = vpop.f32.mrf.mxu0
        %v1717 = vadd.f32 %v1638, %v1716
        %v1718 = vpop.f32.mrf.mxu0
        %1719 = vmatprep.mubr.f32.mxu0 0.0
        %1720 = vmatmul.mubr.f32.gmra.mxu0 %v1614
        %v1721 = vpop.f32.mrf.mxu0
        %v1722 = vadd.f32 %v1638, %v1721
        %v1723 = vpop.f32.mrf.mxu0
        %1724 = vdwg.mxu0
        %v1725 = vmax.f32 %v1707, 0.0
        %v1726 = vmax.f32 %v1712, 0.0
        %v1727 = vmax.f32 %v1717, 0.0
        %v1728 = vmax.f32 %v1722, 0.0
        %1729 = vmatprep.subr.mxu0 0.0
        %1730 = vmatpush1.msra.mxu0 0.0
        %1731 = vmatprep.subr.mxu0 0.0
        %1732 = vmatpush1.msra.mxu0 0.0
        %1733 = vmatprep.subr.mxu0 0.0
        %1734 = vmatpush1.msra.mxu0 0.0
        %1735 = vmatprep.subr.mxu0 0.0
        %1736 = vmatpush1.msra.mxu0 0.0
        %1737 = vmatprep.subr.mxu0 0.0
        %1738 = vmatpush1.msra.mxu0 0.0
        %1739 = vmatprep.subr.mxu0 0.0
        %1740 = vmatpush1.msra.mxu0 0.0
        %1741 = vmatprep.subr.mxu0 0.0
        %1742 = vmatpush1.msra.mxu0 0.0
        %1743 = vmatprep.subr.mxu0 0.0
        %1744 = vmatpush1.msra.mxu0 0.0
        %1745 = vmatprep.subr.mxu0 0.0
        %1746 = vmatpush1.msra.mxu0 0.0
        %1747 = vmatprep.subr.mxu0 0.0
        %1748 = vmatpush1.msra.mxu0 0.0
        %1749 = vmatprep.subr.mxu0 0.0
        %1750 = vmatpush1.msra.mxu0 0.0
        %1751 = vmatprep.subr.mxu0 0.0
        %1752 = vmatpush1.msra.mxu0 0.0
        %1753 = vmatprep.subr.mxu0 0.0
        %1754 = vmatpush1.msra.mxu0 %v1728
        %1755 = vmatprep.subr.mxu0 0.0
        %1756 = vmatpush1.msra.mxu0 %v1727
        %1757 = vmatprep.subr.mxu0 0.0
        %1758 = vmatpush1.msra.mxu0 %v1726
        %1759 = vmatprep.subr.mxu0 0.0
        %1760 = vmatpush1.msra.mxu0 %v1725
        %1761 = vmatprep.subr.mxu0 0.0
        %1762 = vmatpush2.msra.mxu0 0.0
        %1763 = vmatprep.subr.mxu0 0.0
        %1764 = vmatpush2.msra.mxu0 0.0
        %1765 = vmatprep.subr.mxu0 0.0
        %1766 = vmatpush2.msra.mxu0 0.0
        %1767 = vmatprep.subr.mxu0 0.0
        %1768 = vmatpush2.msra.mxu0 0.0
        %1769 = vmatprep.subr.mxu0 0.0
        %1770 = vmatpush2.msra.mxu0 0.0
        %1771 = vmatprep.subr.mxu0 0.0
        %1772 = vmatpush2.msra.mxu0 0.0
        %1773 = vmatprep.subr.mxu0 0.0
        %1774 = vmatpush2.msra.mxu0 0.0
        %1775 = vmatprep.subr.mxu0 0.0
        %1776 = vmatpush2.msra.mxu0 0.0
        %1777 = vmatprep.subr.mxu0 0.0
        %1778 = vmatpush2.msra.mxu0 0.0
        %1779 = vmatprep.subr.mxu0 0.0
        %1780 = vmatpush2.msra.mxu0 0.0
        %1781 = vmatprep.subr.mxu0 0.0
        %1782 = vmatpush2.msra.mxu0 0.0
        %1783 = vmatprep.subr.mxu0 0.0
        %1784 = vmatpush2.msra.mxu0 0.0
        %1785 = vmatprep.subr.mxu0 0.0
        %1786 = vmatpush2.msra.mxu0 0.0
        %1787 = vmatprep.subr.mxu0 0.0
        %1788 = vmatpush2.msra.mxu0 0.0
        %1789 = vmatprep.subr.mxu0 0.0
        %1790 = vmatpush2.msra.mxu0 0.0
        %1791 = vmatprep.subr.mxu0 0.0
        %1792 = vmatpush2.msra.mxu0 0.0
        %1793 = vmatprep.mubr.f32.mxu0 0.0
        %1794 = vmatmul.mubr.f32.gmra.mxu0 %v633
        %v1795 = vpop.f32.mrf.mxu0
        %v1796 = vadd.f32 0.0, %v1795
        %v1797 = vpop.f32.mrf.mxu0
        %1798 = vdwg.mxu0
        %s1799 = scalar_lea.vmem %s540, 256 [#allocation12]
        %v1800 = vld [vmem:[%s1799] sm:$0xff]
        %v1801 = vld [vmem:[%s1799 + $0x8] sm:$0xff]
        %v1802 = vld [vmem:[%s1799 + $0x10] sm:$0xff]
        %v1803 = vld [vmem:[%s1799 + $0x18] sm:$0xff]
        %v1804 = vld [vmem:[%s1799 + $0x20] sm:$0xff]
        %v1805 = vld [vmem:[%s1799 + $0x28] sm:$0xff]
        %v1806 = vld [vmem:[%s1799 + $0x30] sm:$0xff]
        %v1807 = vld [vmem:[%s1799 + $0x38] sm:$0xff]
        %v1808 = vld [vmem:[%s1799 + $0x40] sm:$0xff]
        %v1809 = vld [vmem:[%s1799 + $0x48] sm:$0xff]
        %v1810 = vld [vmem:[%s1799 + $0x50] sm:$0xff]
        %v1811 = vld [vmem:[%s1799 + $0x58] sm:$0xff]
        %v1812 = vld [vmem:[%s1799 + $0x60] sm:$0xff]
        %v1813 = vld [vmem:[%s1799 + $0x68] sm:$0xff]
        %v1814 = vld [vmem:[%s1799 + $0x70] sm:$0xff]
        %v1815 = vld [vmem:[%s1799 + $0x78] sm:$0xff]
        %s1816 = scalar_lea.vmem %s549, 2 [#allocation13]
        %v1817 = vld [vmem:[%s1816] sm:$0x1]
        %v1819 = vlaneseq
        %v1820 = vshrl.u32 %v1819, 7
        %v1821 = vsub.s32 0, %v1820
        %v1822 = vrot.slane %v1817, %v1821
        %1824 = vmatprep.subr.mxu0 0.0
        %1825 = vmatpush1.msra.mxu0 %v1815
        %1826 = vmatprep.subr.mxu0 0.0
        %1827 = vmatpush1.msra.mxu0 %v1814
        %1828 = vmatprep.subr.mxu0 0.0
        %1829 = vmatpush1.msra.mxu0 %v1813
        %1830 = vmatprep.subr.mxu0 0.0
        %1831 = vmatpush1.msra.mxu0 %v1812
        %1832 = vmatprep.subr.mxu0 0.0
        %1833 = vmatpush1.msra.mxu0 %v1811
        %1834 = vmatprep.subr.mxu0 0.0
        %1835 = vmatpush1.msra.mxu0 %v1810
        %1836 = vmatprep.subr.mxu0 0.0
        %1837 = vmatpush1.msra.mxu0 %v1809
        %1838 = vmatprep.subr.mxu0 0.0
        %1839 = vmatpush1.msra.mxu0 %v1808
        %1840 = vmatprep.subr.mxu0 0.0
        %1841 = vmatpush1.msra.mxu0 %v1807
        %1842 = vmatprep.subr.mxu0 0.0
        %1843 = vmatpush1.msra.mxu0 %v1806
        %1844 = vmatprep.subr.mxu0 0.0
        %1845 = vmatpush1.msra.mxu0 %v1805
        %1846 = vmatprep.subr.mxu0 0.0
        %1847 = vmatpush1.msra.mxu0 %v1804
        %1848 = vmatprep.subr.mxu0 0.0
        %1849 = vmatpush1.msra.mxu0 %v1803
        %1850 = vmatprep.subr.mxu0 0.0
        %1851 = vmatpush1.msra.mxu0 %v1802
        %1852 = vmatprep.subr.mxu0 0.0
        %1853 = vmatpush1.msra.mxu0 %v1801
        %1854 = vmatprep.subr.mxu0 0.0
        %1855 = vmatpush1.msra.mxu0 %v1800
        %1856 = vmatprep.subr.mxu0 0.0
        %1857 = vmatpush2.msra.mxu0 0.0
        %1858 = vmatprep.subr.mxu0 0.0
        %1859 = vmatpush2.msra.mxu0 0.0
        %1860 = vmatprep.subr.mxu0 0.0
        %1861 = vmatpush2.msra.mxu0 0.0
        %1862 = vmatprep.subr.mxu0 0.0
        %1863 = vmatpush2.msra.mxu0 0.0
        %1864 = vmatprep.subr.mxu0 0.0
        %1865 = vmatpush2.msra.mxu0 0.0
        %1866 = vmatprep.subr.mxu0 0.0
        %1867 = vmatpush2.msra.mxu0 0.0
        %1868 = vmatprep.subr.mxu0 0.0
        %1869 = vmatpush2.msra.mxu0 0.0
        %1870 = vmatprep.subr.mxu0 0.0
        %1871 = vmatpush2.msra.mxu0 0.0
        %1872 = vmatprep.subr.mxu0 0.0
        %1873 = vmatpush2.msra.mxu0 0.0
        %1874 = vmatprep.subr.mxu0 0.0
        %1875 = vmatpush2.msra.mxu0 0.0
        %1876 = vmatprep.subr.mxu0 0.0
        %1877 = vmatpush2.msra.mxu0 0.0
        %1878 = vmatprep.subr.mxu0 0.0
        %1879 = vmatpush2.msra.mxu0 0.0
        %1880 = vmatprep.subr.mxu0 0.0
        %1881 = vmatpush2.msra.mxu0 0.0
        %1882 = vmatprep.subr.mxu0 0.0
        %1883 = vmatpush2.msra.mxu0 0.0
        %1884 = vmatprep.subr.mxu0 0.0
        %1885 = vmatpush2.msra.mxu0 0.0
        %1886 = vmatprep.subr.mxu0 0.0
        %1887 = vmatpush2.msra.mxu0 0.0
        %1888 = vmatprep.mubr.f32.mxu0 0.0
        %1889 = vmatmul.mubr.f32.gmra.mxu0 %v1796
        %v1890 = vpop.f32.mrf.mxu0
        %v1891 = vadd.f32 %v1822, %v1890
        %v1892 = vpop.f32.mrf.mxu0
        %1893 = vdwg.mxu0
        %v1894 = vadd.f32 %v1350, %v1891
        %v1895 = vmul.f32 %v1894, %v1894
        %vm1896 = vcmask 1041408
        %v1897 = vsel %vm1896, %v1895, 0.0
        %1898 = vadd.xlane.f32.xlu0 %v1897
        %v1899 = vpop.xlane.xlu0 %1898
        %v1900 = vmax.f32 %v1899, 1e-10
        %v1901 = vrsqrt.pop %v1900
        %v1902 = vmul.f32 %v1894, %v1901
        %1903 = vst [vmem:[%s621] sm:$0x3] %v1902
        %p1904 = scmp.lt.s32.totalorder %s35, 1
        %s1905 = scalar_select %p1904, %s35, 1
        %s1906 = smul.addr %s1905, 2
        %s1907 = scalar_lea.vmem %s9, %s1906
        // Predicated region
        $region89: #{hete_graph_encoder_forward.2} parent=55 // pred_check
          %p1908 = pneg %p282
        $region90: #{hete_graph_encoder_forward.2} parent=55 // pred_check_branch
          %1910 = sbr.rel (%p1908) target = $region92
        $region91: #{hete_graph_encoder_forward.2} parent=55 // pred_region
          _
        $region92: #{hete_graph_encoder_forward.2} parent=55 // pred_fallthru
          _
      $region56: #{hete_graph_encoder_forward.2} parent=5 // pred_fallthru
        _
      %p1911 = scmp.le.s32.totalorder 2, %s30
      // Predicated region
      $region93: #{hete_graph_encoder_forward.2} parent=5 // pred_check
        %p1912 = pneg %p1911
      $region94: #{hete_graph_encoder_forward.2} parent=5 // pred_check_branch
        %1914 = sbr.rel (%p1912) target = $region96
      $region95: #{hete_graph_encoder_forward.2} parent=5 // pred_region
        %s1915 = ssub.s32 %s30, 2
        // Predicated region
        $region97: #{hete_graph_encoder_forward.2} parent=95 // pred_check
          %p1916 = pneg %p288
        $region98: #{hete_graph_encoder_forward.2} parent=95 // pred_check_branch
          %1918 = sbr.rel (%p1916) target = $region100
        $region99: #{hete_graph_encoder_forward.2} parent=95 // pred_region
          %p1919 = scmp.lt.s32.totalorder %s36, 1
          %s1920 = scalar_select %p1919, %s36, 1
          %s1921 = smul.addr %s1920, 2
          %s1922 = scalar_lea.vmem %s9, %s1921
        $region100: #{hete_graph_encoder_forward.2} parent=95 // pred_fallthru
          _
      $region96: #{hete_graph_encoder_forward.2} parent=5 // pred_fallthru
        _
    $region6: #{hete_graph_encoder_forward.2} parent=1 // loop_footer
      %s34 = sadd.s32 1, %s30
    $region7: #{hete_graph_encoder_forward.2} parent=1 // loop_footer_branch
      %29 = sbr.rel target = $region3
    $region8: #{hete_graph_encoder_forward.2} parent=1 // loop_exit
      _
    %1923 = vsyncpa [#allocation3], 1
    %s1924 = scalar_lea.sflag [#allocation3], 1
    %1925 = vsyncpa %s1924, 1
    %1926 = vsyncpa [#allocation5], 1
    %s1927 = scalar_lea.sflag [#allocation5], 1
    %1928 = vsyncpa %s1927, 1
    %1929 = vsyncpa [#allocation8], 1
    %s1930 = scalar_lea.sflag [#allocation8], 1
    %1931 = vsyncpa %s1930, 1
    %1932 = vsyncpa [#allocation11], 1
    %s1933 = scalar_lea.sflag [#allocation11], 1
    %1934 = vsyncpa %s1933, 1
    %1935 = vsyncpa [#allocation14], 1
    %s1936 = scalar_lea.sflag [#allocation14], 1
    %1937 = vsyncpa %s1936, 1

</llo_original>
